<compile_context>
chip_gen: v7x
topology: tpu7x:2x2x1
jax: 0.10.0
libtpu: 0.0.40
codegen_flags: <defaults>
</compile_context>

<pallas_src>
import functools
import math

import jax
import jax.numpy as jnp
from jax.experimental import pallas as pl
from jax.experimental.pallas import tpu as pltpu

EPS = 1e-5  # torch.nn.BatchNorm2d default


# ----------------------------- Pallas kernel --------------------------------

def _up_double_conv_kernel(x2_ref, x1_ref, ut_ref, mask_ref,
                           w1_ref, b1_ref, g1_ref, be1_ref,
                           w2_ref, b2_ref, g2_ref, be2_ref,
                           out_ref, acc1, col1, col2,
                           *, batch, c1, c2, width):
    # Layout (all 2D, lane-dense):
    #   x2_ref  : (batch*C2, H*W)    f32  skip connection, row = n*C2 + c
    #   x1_ref  : (batch*C1, Hl*Wl)  f32  low-res features, row = n*C1 + c
    #   ut_ref  : (Hl*Wl, H*W)       f32  kron(Ah, Aw)^T: fused bilinear
    #                                     align_corners x2 upsample + F.pad
    #   mask_ref: (9, H*W)           f32  0/1 conv border mask per 3x3 tap
    #   w1_ref  : (Cmid, 9*Cin)      bf16 column = (kh*3+kw)*Cin + c,
    #                                     c ordered [x2 channels, x1 channels]
    #   w2_ref  : (Cout, 9*Cmid)     bf16
    #   b/g/be  : (C, 1)             f32  conv bias / BN gamma / BN beta
    #   out_ref : (batch*Cout, H*W)  f32  row = n*Cout + c (free reshape->NCHW)
    #   acc1    : VMEM (batch*Cmid, H*W) f32   conv1 activations (all images)
    #   col1    : VMEM (9*Cin,  H*W) bf16      per-image im2col slab (reused)
    #   col2    : VMEM (9*Cmid, H*W) bf16
    f32 = jnp.float32
    bf16 = jnp.bfloat16
    c_in = c1 + c2
    c_mid = w1_ref.shape[0]
    c_out = w2_ref.shape[0]
    hw = x2_ref.shape[1]

    # ---- fused bilinear x2 upsample (+ pad/crop to skip size): one matmul ----
    x1_up = jnp.dot(x1_ref[...], ut_ref[...],
                    preferred_element_type=f32)            # (batch*C1, H*W)

    masks = mask_ref[...]                                  # (9, H*W) 0/1

    def write_taps(col, stride, off, src, nrows):
        # col[k*stride+off : k*stride+off+nrows, :] = tap-k shifted `src`,
        # border taps zeroed, cast to bf16 at write time (halves col traffic).
        for k in range(9):
            kh, kw = k // 3, k % 3
            delta = (kh - 1) * width + (kw - 1)            # lane offset of tap k
            shifted = src if delta == 0 else pltpu.roll(src, (-delta) % hw, 1)
            col[k * stride + off:k * stride + off + nrows, :] = (
                (shifted * masks[k:k + 1, :]).astype(bf16))

    def bn_scale_shift(acc, rows, gamma, beta):
        # single-pass training-mode BatchNorm2d stats over (N, H, W):
        # accumulate sum / sumsq per channel, var = E[x^2] - mean^2 (biased).
        count = float(batch * hw)
        s = jnp.zeros((rows, 1), f32)
        q = jnp.zeros((rows, 1), f32)
        for n in range(batch):
            blk = acc[n * rows:(n + 1) * rows, :]
            s = s + jnp.sum(blk, axis=1, keepdims=True)
            q = q + jnp.sum(blk * blk, axis=1, keepdims=True)
        mean = s * (1.0 / count)
        var = jnp.maximum(q * (1.0 / count) - mean * mean, 0.0)
        scale = gamma * jax.lax.rsqrt(var + EPS)
        return scale, beta - mean * scale

    # ---- conv1: 3x3, pad=1, over concat([x2, x1_up], channel) -----------------
    for n in range(batch):
        write_taps(col1, c_in, 0, x2_ref[n * c2:(n + 1) * c2, :], c2)
        write_taps(col1, c_in, c2, x1_up[n * c1:(n + 1) * c1, :], c1)
        acc1[n * c_mid:(n + 1) * c_mid, :] = (
            jnp.dot(w1_ref[...], col1[...], preferred_element_type=f32)
            + b1_ref[...])

    # ---- BN1 (training batch stats) + ReLU, in place --------------------------
    scale1, shift1 = bn_scale_shift(acc1, c_mid, g1_ref[...], be1_ref[...])
    for n in range(batch):
        blk = acc1[n * c_mid:(n + 1) * c_mid, :]
        acc1[n * c_mid:(n + 1) * c_mid, :] = jnp.maximum(blk * scale1 + shift1,
                                                         0.0)

    # ---- conv2: 3x3, pad=1 -----------------------------------------------------
    for n in range(batch):
        write_taps(col2, c_mid, 0, acc1[n * c_mid:(n + 1) * c_mid, :], c_mid)
        out_ref[n * c_out:(n + 1) * c_out, :] = (
            jnp.dot(w2_ref[...], col2[...], preferred_element_type=f32)
            + b2_ref[...])

    # ---- BN2 + ReLU, in place on the VMEM-resident output block ---------------
    scale2, shift2 = bn_scale_shift(out_ref, c_out, g2_ref[...], be2_ref[...])
    for n in range(batch):
        blk = out_ref[n * c_out:(n + 1) * c_out, :]
        out_ref[n * c_out:(n + 1) * c_out, :] = jnp.maximum(blk * scale2 + shift2,
                                                            0.0)


# ------------------------------- JAX glue ------------------------------------

def _interp_matrix(n_in):
    # PyTorch nn.Upsample(scale_factor=2, mode='bilinear', align_corners=True)
    # expressed as a dense (2*n_in, n_in) interpolation matrix.
    n_out = 2 * n_in
    src = jnp.arange(n_out, dtype=jnp.float32) * ((n_in - 1) / (n_out - 1))
    i0 = jnp.floor(src).astype(jnp.int32)
    i1 = jnp.minimum(i0 + 1, n_in - 1)
    t = src - i0.astype(jnp.float32)
    eye = jnp.eye(n_in, dtype=jnp.float32)
    return (1.0 - t)[:, None] * eye[i0] + t[:, None] * eye[i1]


def _embed_rows(a, n_out, offset):
    # Embed rows of `a` into an (n_out, a.shape[1]) matrix starting at row
    # `offset` (negative -> crop), zeros elsewhere.  Implements F.pad along one
    # spatial axis, including negative padding.
    idx = jnp.arange(n_out) - offset
    valid = (idx >= 0) & (idx < a.shape[0])
    return jnp.where(valid[:, None], a[jnp.clip(idx, 0, a.shape[0] - 1)], 0.0)


def _tap_masks(h, w):
    # (9, h*w) 0/1 masks: mask[kh*3+kw, h*W+w] == 1 iff input tap
    # (h+kh-1, w+kw-1) is inside the image (conv padding=1 border handling).
    f32 = jnp.float32
    hh = jnp.arange(h, dtype=jnp.int32)
    ww = jnp.arange(w, dtype=jnp.int32)
    rows = []
    for kh in range(3):
        for kw in range(3):
            mh = (((hh + (kh - 1)) >= 0) & ((hh + (kh - 1)) < h)).astype(f32)
            mw = (((ww + (kw - 1)) >= 0) & ((ww + (kw - 1)) < w)).astype(f32)
            rows.append(jnp.outer(mh, mw).reshape(h * w))
    return jnp.stack(rows, axis=0)


def _vmem_limit_bytes(footprint_bytes):
    # size the scoped VMEM limit from the actual footprint + per-generation cap
    try:
        cap = pltpu.get_tpu_info().vmem_capacity_bytes
    except Exception:  # pragma: no cover - conservative fallback
        cap = 64 * 1024 * 1024
    return int(min(0.75 * cap, max(16 * 1024 * 1024, 4 * footprint_bytes)))


def _up_pallas(x1, x2, params):
    n, c1, hl, wl = x1.shape
    n2, c2, h, w = x2.shape
    assert n == n2
    c_in = c1 + c2
    c_mid = params["w1"].shape[0]
    c_out = params["w2"].shape[0]
    hw = h * w

    # separable bilinear-upsample + pad matrices, combined (kron) so the
    # upsample is a single in-kernel matmul.
    # TODO(synk): keep Ah/Aw separable (two small matmuls) for large spatial dims.
    ah = _embed_rows(_interp_matrix(hl), h, (h - 2 * hl) // 2)    # (h, hl)
    aw = _embed_rows(_interp_matrix(wl), w, (w - 2 * wl) // 2)    # (w, wl)
    ut = jnp.kron(ah, aw).T                                       # (hl*wl, h*w)
    masks = _tap_masks(h, w)                                      # (9, h*w)

    x2r = x2.reshape(n * c2, hw)              # free reshapes (row-major NCHW)
    x1r = x1.reshape(n * c1, hl * wl)

    kernel = functools.partial(_up_double_conv_kernel,
                               batch=n, c1=c1, c2=c2, width=w)

    def nbytes(shape, dtype):
        return math.prod(shape) * jnp.dtype(dtype).itemsize

    footprint = (nbytes(x2r.shape, jnp.float32)
                 + nbytes(x1r.shape, jnp.float32)
                 + nbytes(ut.shape, jnp.float32)
                 + nbytes(masks.shape, jnp.float32)
                 + nbytes((n * c_out, hw), jnp.float32)      # output
                 + nbytes((n * c_mid, hw), jnp.float32)      # acc1
                 + nbytes((9 * c_in, hw), jnp.bfloat16)      # col1
                 + nbytes((9 * c_mid, hw), jnp.bfloat16)     # col2
                 + 2 * nbytes(params["w1"].shape, jnp.bfloat16)
                 + 2 * nbytes(params["w2"].shape, jnp.bfloat16))

    vmem = pl.BlockSpec(memory_space=pltpu.MemorySpace.VMEM)
    y = pl.pallas_call(
        kernel,
        out_shape=jax.ShapeDtypeStruct((n * c_out, hw), jnp.float32),
        in_specs=[vmem] * 12,
        out_specs=vmem,
        scratch_shapes=[
            pltpu.VMEM((n * c_mid, hw), jnp.float32),    # conv1 activations
            pltpu.VMEM((9 * c_in, hw), jnp.bfloat16),    # per-image im2col (conv1)
            pltpu.VMEM((9 * c_mid, hw), jnp.bfloat16),   # per-image im2col (conv2)
        ],
        compiler_params=pltpu.CompilerParams(
            vmem_limit_bytes=_vmem_limit_bytes(footprint)),
    )(x2r, x1r, ut, masks,
      params["w1"], params["b1"], params["g1"], params["be1"],
      params["w2"], params["b2"], params["g2"], params["be2"])
    return y.reshape(n, c_out, h, w)          # free reshape back to NCHW


@jax.jit
def up_forward(x1, x2, params):
    """Up.forward(x1, x2): NCHW in, NCHW out (bilinear=True path)."""
    return _up_pallas(x1, x2, params)


def init_up_params(key, in_channels, out_channels):
    """Up(in_channels, out_channels, bilinear=True) -> DoubleConv(in, out//2)."""
    c_mid = out_channels // 2      # DoubleConv(in, out//2): mid = out//2
    c_out = out_channels // 2
    ks = jax.random.split(key, 8)
    # conv weights pre-cast to MXU-ready bf16, flat (C_out, 9*C_in),
    # column = (kh*3+kw)*C_in + c  (== torch weight[o, c, kh, kw])
    w1 = (0.1 * jax.random.normal(ks[0], (c_mid, 9 * in_channels),
                                  jnp.float32)).astype(jnp.bfloat16)
    w2 = (0.1 * jax.random.normal(ks[1], (c_out, 9 * c_mid),
                                  jnp.float32)).astype(jnp.bfloat16)
    return {
        "w1": w1,
        "b1": 0.1 * jax.random.normal(ks[2], (c_mid, 1), jnp.float32),
        "g1": 1.0 + 0.1 * jax.random.normal(ks[3], (c_mid, 1), jnp.float32),
        "be1": 0.1 * jax.random.normal(ks[4], (c_mid, 1), jnp.float32),
        "w2": w2,
        "b2": 0.1 * jax.random.normal(ks[5], (c_out, 1), jnp.float32),
        "g2": 1.0 + 0.1 * jax.random.normal(ks[6], (c_out, 1), jnp.float32),
        "be2": 0.1 * jax.random.normal(ks[7], (c_out, 1), jnp.float32),
    }


# ---------------------- pure-JAX reference (for checking) --------------------

def _reference_up_forward(x1, x2, params):
    f32 = jnp.float32

    def upsample(x):
        nb, c, hh, ww = x.shape
        ho, wo = 2 * hh, 2 * ww

        def src(n_in, n_out):
            return jnp.arange(n_out, dtype=f32) * ((n_in - 1) / (n_out - 1))

        sh, sw = src(hh, ho), src(ww, wo)
        h0 = jnp.floor(sh).astype(jnp.int32)
        h1 = jnp.minimum(h0 + 1, hh - 1)
        th = sh - h0.astype(f32)
        w0 = jnp.floor(sw).astype(jnp.int32)
        w1 = jnp.minimum(w0 + 1, ww - 1)
        tw = sw - w0.astype(f32)
        xh0, xh1 = x[:, :, h0, :], x[:, :, h1, :]
        top = xh0[:, :, :, w0] * (1 - tw) + xh0[:, :, :, w1] * tw
        bot = xh1[:, :, :, w0] * (1 - tw) + xh1[:, :, :, w1] * tw
        return top * (1 - th)[:, None] + bot * th[:, None]

    def conv(x, w_flat, b):
        co = w_flat.shape[0]
        ci = w_flat.shape[1] // 9
        w_oihw = w_flat.astype(f32).reshape(co, 3, 3, ci).transpose(0, 3, 1, 2)
        y = jax.lax.conv_general_dilated(
            x, w_oihw, window_strides=(1, 1), padding=((1, 1), (1, 1)),
            dimension_numbers=("NCHW", "OIHW", "NCHW"),
            precision=jax.lax.Precision.HIGHEST)
        return y + b.reshape(1, -1, 1, 1)

    def bn_relu(x, g, be):
        mean = x.mean(axis=(0, 2, 3), keepdims=True)
        var = x.var(axis=(0, 2, 3), keepdims=True)
        y = ((x - mean) * jax.lax.rsqrt(var + EPS)
             * g.reshape(1, -1, 1, 1) + be.reshape(1, -1, 1, 1))
        return jnp.maximum(y, 0.0)

    x1u = upsample(x1)
    dy = x2.shape[2] - x1u.shape[2]
    dx = x2.shape[3] - x1u.shape[3]
    if dy or dx:
        x1u = jnp.pad(x1u, ((0, 0), (0, 0),
                            (dy // 2, dy - dy // 2), (dx // 2, dx - dx // 2)))
    x = jnp.concatenate([x2, x1u], axis=1)
    h1 = bn_relu(conv(x, params["w1"], params["b1"]),
                 params["g1"], params["be1"])
    return bn_relu(conv(h1, params["w2"], params["b2"]),
                   params["g2"], params["be2"])


if __name__ == "__main__":
    key = jax.random.PRNGKey(0)
    kx1, kx2, kp = jax.random.split(key, 3)

    # Up(in_channels=8, out_channels=8, bilinear=True):
    #   x1: low-res feature map, x2: skip connection (2x spatial of x1),
    #   channels(x1) + channels(x2) = in_channels = 8.
    x1 = jax.random.normal(kx1, (2, 4, 8, 8), jnp.float32)     # NCHW
    x2 = jax.random.normal(kx2, (2, 4, 16, 16), jnp.float32)   # NCHW
    params = init_up_params(kp, in_channels=8, out_channels=8)

    y = up_forward(x1, x2, params)
    jax.block_until_ready(y)

    assert y.shape == (2, 4, 16, 16), y.shape
    assert bool(jnp.all(jnp.isfinite(y)))

    # loose parity check vs a pure-JAX reference (kernel uses bf16 conv
    # operands vs the f32 reference -> small numerical differences expected)
    y_ref = _reference_up_forward(x1, x2, params)
    err = float(jnp.max(jnp.abs(y - y_ref)))
    assert err < 0.2, f"max abs error vs reference: {err}"

    print("KERNEL_OK")
</pallas_src>

<mosaic_0001>
module attributes {stable_mosaic.version = 11 : i64} {
  func.func @_up_double_conv_kernel(%arg0: memref<8x256xf32, #tpu.memory_space<vmem>>, %arg1: memref<8x64xf32, #tpu.memory_space<vmem>>, %arg2: memref<64x256xf32, #tpu.memory_space<vmem>>, %arg3: memref<9x256xf32, #tpu.memory_space<vmem>>, %arg4: memref<4x72xbf16, #tpu.memory_space<vmem>>, %arg5: memref<4x1xf32, #tpu.memory_space<vmem>>, %arg6: memref<4x1xf32, #tpu.memory_space<vmem>>, %arg7: memref<4x1xf32, #tpu.memory_space<vmem>>, %arg8: memref<4x36xbf16, #tpu.memory_space<vmem>>, %arg9: memref<4x1xf32, #tpu.memory_space<vmem>>, %arg10: memref<4x1xf32, #tpu.memory_space<vmem>>, %arg11: memref<4x1xf32, #tpu.memory_space<vmem>>, %arg12: memref<8x256xf32, #tpu.memory_space<vmem>>, %arg13: memref<8x256xf32, #tpu.memory_space<vmem>>, %arg14: memref<72x256xbf16, #tpu.memory_space<vmem>>, %arg15: memref<36x256xbf16, #tpu.memory_space<vmem>>) attributes {dimension_semantics = [], scalar_prefetch = 0 : i64, scratch_operands = 3 : i64, tpu.core_type = #tpu.core_type<tc>} {
    %c0 = arith.constant 0 : index
    %c0_0 = arith.constant 0 : index
    %0 = vector.load %arg1[%c0, %c0_0] : memref<8x64xf32, #tpu.memory_space<vmem>>, vector<8x64xf32>
    %c0_1 = arith.constant 0 : index
    %c0_2 = arith.constant 0 : index
    %1 = vector.load %arg2[%c0_1, %c0_2] : memref<64x256xf32, #tpu.memory_space<vmem>>, vector<64x256xf32>
    %cst = arith.constant dense<0.000000e+00> : vector<8x256xf32>
    %2 = tpu.matmul %0, %1, %cst {dimension_numbers = #tpu.dot_dimension_numbers<[1], [0], [0], [1], [0, 0, 1, 1], [], []>} : vector<8x64xf32>, vector<64x256xf32>, vector<8x256xf32> -> vector<8x256xf32>
    %c0_3 = arith.constant 0 : index
    %c0_4 = arith.constant 0 : index
    %3 = vector.load %arg3[%c0_3, %c0_4] : memref<9x256xf32, #tpu.memory_space<vmem>>, vector<9x256xf32>
    %c0_5 = arith.constant 0 : index
    %c0_6 = arith.constant 0 : index
    %4 = vector.load %arg0[%c0_5, %c0_6] : memref<8x256xf32, #tpu.memory_space<vmem>>, vector<4x256xf32>
    %c17_i32 = arith.constant 17 : i32
    %5 = tpu.dynamic_rotate %4 by %c17_i32 dim 1 : vector<4x256xf32>, i32 -> vector<4x256xf32>
    %6 = vector.extract_strided_slice %3 {offsets = [0, 0], sizes = [1, 256], strides = [1, 1]} : vector<9x256xf32> to vector<1x256xf32>
    %7 = vector.broadcast %6 : vector<1x256xf32> to vector<4x256xf32>
    %8 = arith.mulf %5, %7 : vector<4x256xf32>
    %9 = arith.truncf %8 : vector<4x256xf32> to vector<4x256xbf16>
    %c0_7 = arith.constant 0 : index
    %c0_8 = arith.constant 0 : index
    %10 = vector.load %arg14[%c0_7, %c0_8] : memref<72x256xbf16, #tpu.memory_space<vmem>>, vector<4x256xbf16>
    tpu.vector_store %arg14[%c0_7, %c0_8], %9 {strides = array<i32>} : memref<72x256xbf16, #tpu.memory_space<vmem>>, vector<4x256xbf16>,
    %c16_i32 = arith.constant 16 : i32
    %11 = tpu.dynamic_rotate %4 by %c16_i32 dim 1 : vector<4x256xf32>, i32 -> vector<4x256xf32>
    %12 = vector.extract_strided_slice %3 {offsets = [1, 0], sizes = [1, 256], strides = [1, 1]} : vector<9x256xf32> to vector<1x256xf32>
    %13 = vector.broadcast %12 : vector<1x256xf32> to vector<4x256xf32>
    %14 = arith.mulf %11, %13 : vector<4x256xf32>
    %15 = arith.truncf %14 : vector<4x256xf32> to vector<4x256xbf16>
    %c8 = arith.constant 8 : index
    %c0_9 = arith.constant 0 : index
    %16 = vector.load %arg14[%c8, %c0_9] : memref<72x256xbf16, #tpu.memory_space<vmem>>, vector<4x256xbf16>
    tpu.vector_store %arg14[%c8, %c0_9], %15 {strides = array<i32>} : memref<72x256xbf16, #tpu.memory_space<vmem>>, vector<4x256xbf16>,
    %c15_i32 = arith.constant 15 : i32
    %17 = tpu.dynamic_rotate %4 by %c15_i32 dim 1 : vector<4x256xf32>, i32 -> vector<4x256xf32>
    %18 = vector.extract_strided_slice %3 {offsets = [2, 0], sizes = [1, 256], strides = [1, 1]} : vector<9x256xf32> to vector<1x256xf32>
    %19 = vector.broadcast %18 : vector<1x256xf32> to vector<4x256xf32>
    %20 = arith.mulf %17, %19 : vector<4x256xf32>
    %21 = arith.truncf %20 : vector<4x256xf32> to vector<4x256xbf16>
    %c16 = arith.constant 16 : index
    %c0_10 = arith.constant 0 : index
    %22 = vector.load %arg14[%c16, %c0_10] : memref<72x256xbf16, #tpu.memory_space<vmem>>, vector<4x256xbf16>
    tpu.vector_store %arg14[%c16, %c0_10], %21 {strides = array<i32>} : memref<72x256xbf16, #tpu.memory_space<vmem>>, vector<4x256xbf16>,
    %c1_i32 = arith.constant 1 : i32
    %23 = tpu.dynamic_rotate %4 by %c1_i32 dim 1 : vector<4x256xf32>, i32 -> vector<4x256xf32>
    %24 = vector.extract_strided_slice %3 {offsets = [3, 0], sizes = [1, 256], strides = [1, 1]} : vector<9x256xf32> to vector<1x256xf32>
    %25 = vector.broadcast %24 : vector<1x256xf32> to vector<4x256xf32>
    %26 = arith.mulf %23, %25 : vector<4x256xf32>
    %27 = arith.truncf %26 : vector<4x256xf32> to vector<4x256xbf16>
    %c24 = arith.constant 24 : index
    %c0_11 = arith.constant 0 : index
    %28 = vector.load %arg14[%c24, %c0_11] : memref<72x256xbf16, #tpu.memory_space<vmem>>, vector<4x256xbf16>
    tpu.vector_store %arg14[%c24, %c0_11], %27 {strides = array<i32>} : memref<72x256xbf16, #tpu.memory_space<vmem>>, vector<4x256xbf16>,
    %29 = vector.extract_strided_slice %3 {offsets = [4, 0], sizes = [1, 256], strides = [1, 1]} : vector<9x256xf32> to vector<1x256xf32>
    %30 = vector.broadcast %29 : vector<1x256xf32> to vector<4x256xf32>
    %31 = arith.mulf %4, %30 : vector<4x256xf32>
    %32 = arith.truncf %31 : vector<4x256xf32> to vector<4x256xbf16>
    %c32 = arith.constant 32 : index
    %c0_12 = arith.constant 0 : index
    %33 = vector.load %arg14[%c32, %c0_12] : memref<72x256xbf16, #tpu.memory_space<vmem>>, vector<4x256xbf16>
    tpu.vector_store %arg14[%c32, %c0_12], %32 {strides = array<i32>} : memref<72x256xbf16, #tpu.memory_space<vmem>>, vector<4x256xbf16>,
    %c255_i32 = arith.constant 255 : i32
    %34 = tpu.dynamic_rotate %4 by %c255_i32 dim 1 : vector<4x256xf32>, i32 -> vector<4x256xf32>
    %35 = vector.extract_strided_slice %3 {offsets = [5, 0], sizes = [1, 256], strides = [1, 1]} : vector<9x256xf32> to vector<1x256xf32>
    %36 = vector.broadcast %35 : vector<1x256xf32> to vector<4x256xf32>
    %37 = arith.mulf %34, %36 : vector<4x256xf32>
    %38 = arith.truncf %37 : vector<4x256xf32> to vector<4x256xbf16>
    %c40 = arith.constant 40 : index
    %c0_13 = arith.constant 0 : index
    %39 = vector.load %arg14[%c40, %c0_13] : memref<72x256xbf16, #tpu.memory_space<vmem>>, vector<4x256xbf16>
    tpu.vector_store %arg14[%c40, %c0_13], %38 {strides = array<i32>} : memref<72x256xbf16, #tpu.memory_space<vmem>>, vector<4x256xbf16>,
    %c241_i32 = arith.constant 241 : i32
    %40 = tpu.dynamic_rotate %4 by %c241_i32 dim 1 : vector<4x256xf32>, i32 -> vector<4x256xf32>
    %41 = vector.extract_strided_slice %3 {offsets = [6, 0], sizes = [1, 256], strides = [1, 1]} : vector<9x256xf32> to vector<1x256xf32>
    %42 = vector.broadcast %41 : vector<1x256xf32> to vector<4x256xf32>
    %43 = arith.mulf %40, %42 : vector<4x256xf32>
    %44 = arith.truncf %43 : vector<4x256xf32> to vector<4x256xbf16>
    %c48 = arith.constant 48 : index
    %c0_14 = arith.constant 0 : index
    %45 = vector.load %arg14[%c48, %c0_14] : memref<72x256xbf16, #tpu.memory_space<vmem>>, vector<4x256xbf16>
    tpu.vector_store %arg14[%c48, %c0_14], %44 {strides = array<i32>} : memref<72x256xbf16, #tpu.memory_space<vmem>>, vector<4x256xbf16>,
    %c240_i32 = arith.constant 240 : i32
    %46 = tpu.dynamic_rotate %4 by %c240_i32 dim 1 : vector<4x256xf32>, i32 -> vector<4x256xf32>
    %47 = vector.extract_strided_slice %3 {offsets = [7, 0], sizes = [1, 256], strides = [1, 1]} : vector<9x256xf32> to vector<1x256xf32>
    %48 = vector.broadcast %47 : vector<1x256xf32> to vector<4x256xf32>
    %49 = arith.mulf %46, %48 : vector<4x256xf32>
    %50 = arith.truncf %49 : vector<4x256xf32> to vector<4x256xbf16>
    %c56 = arith.constant 56 : index
    %c0_15 = arith.constant 0 : index
    %51 = vector.load %arg14[%c56, %c0_15] : memref<72x256xbf16, #tpu.memory_space<vmem>>, vector<4x256xbf16>
    tpu.vector_store %arg14[%c56, %c0_15], %50 {strides = array<i32>} : memref<72x256xbf16, #tpu.memory_space<vmem>>, vector<4x256xbf16>,
    %c239_i32 = arith.constant 239 : i32
    %52 = tpu.dynamic_rotate %4 by %c239_i32 dim 1 : vector<4x256xf32>, i32 -> vector<4x256xf32>
    %53 = vector.extract_strided_slice %3 {offsets = [8, 0], sizes = [1, 256], strides = [1, 1]} : vector<9x256xf32> to vector<1x256xf32>
    %54 = vector.broadcast %53 : vector<1x256xf32> to vector<4x256xf32>
    %55 = arith.mulf %52, %54 : vector<4x256xf32>
    %56 = arith.truncf %55 : vector<4x256xf32> to vector<4x256xbf16>
    %c64 = arith.constant 64 : index
    %c0_16 = arith.constant 0 : index
    %57 = vector.load %arg14[%c64, %c0_16] : memref<72x256xbf16, #tpu.memory_space<vmem>>, vector<4x256xbf16>
    tpu.vector_store %arg14[%c64, %c0_16], %56 {strides = array<i32>} : memref<72x256xbf16, #tpu.memory_space<vmem>>, vector<4x256xbf16>,
    %58 = vector.extract_strided_slice %2 {offsets = [0, 0], sizes = [4, 256], strides = [1, 1]} : vector<8x256xf32> to vector<4x256xf32>
    %c17_i32_17 = arith.constant 17 : i32
    %59 = tpu.dynamic_rotate %58 by %c17_i32_17 dim 1 : vector<4x256xf32>, i32 -> vector<4x256xf32>
    %60 = vector.extract_strided_slice %3 {offsets = [0, 0], sizes = [1, 256], strides = [1, 1]} : vector<9x256xf32> to vector<1x256xf32>
    %61 = vector.broadcast %60 : vector<1x256xf32> to vector<4x256xf32>
    %62 = arith.mulf %59, %61 : vector<4x256xf32>
    %63 = arith.truncf %62 : vector<4x256xf32> to vector<4x256xbf16>
    %c4 = arith.constant 4 : index
    %c0_18 = arith.constant 0 : index
    %64 = vector.load %arg14[%c4, %c0_18] : memref<72x256xbf16, #tpu.memory_space<vmem>>, vector<4x256xbf16>
    tpu.vector_store %arg14[%c4, %c0_18], %63 {strides = array<i32>} : memref<72x256xbf16, #tpu.memory_space<vmem>>, vector<4x256xbf16>,
    %c16_i32_19 = arith.constant 16 : i32
    %65 = tpu.dynamic_rotate %58 by %c16_i32_19 dim 1 : vector<4x256xf32>, i32 -> vector<4x256xf32>
    %66 = vector.extract_strided_slice %3 {offsets = [1, 0], sizes = [1, 256], strides = [1, 1]} : vector<9x256xf32> to vector<1x256xf32>
    %67 = vector.broadcast %66 : vector<1x256xf32> to vector<4x256xf32>
    %68 = arith.mulf %65, %67 : vector<4x256xf32>
    %69 = arith.truncf %68 : vector<4x256xf32> to vector<4x256xbf16>
    %c12 = arith.constant 12 : index
    %c0_20 = arith.constant 0 : index
    %70 = vector.load %arg14[%c12, %c0_20] : memref<72x256xbf16, #tpu.memory_space<vmem>>, vector<4x256xbf16>
    tpu.vector_store %arg14[%c12, %c0_20], %69 {strides = array<i32>} : memref<72x256xbf16, #tpu.memory_space<vmem>>, vector<4x256xbf16>,
    %c15_i32_21 = arith.constant 15 : i32
    %71 = tpu.dynamic_rotate %58 by %c15_i32_21 dim 1 : vector<4x256xf32>, i32 -> vector<4x256xf32>
    %72 = vector.extract_strided_slice %3 {offsets = [2, 0], sizes = [1, 256], strides = [1, 1]} : vector<9x256xf32> to vector<1x256xf32>
    %73 = vector.broadcast %72 : vector<1x256xf32> to vector<4x256xf32>
    %74 = arith.mulf %71, %73 : vector<4x256xf32>
    %75 = arith.truncf %74 : vector<4x256xf32> to vector<4x256xbf16>
    %c20 = arith.constant 20 : index
    %c0_22 = arith.constant 0 : index
    %76 = vector.load %arg14[%c20, %c0_22] : memref<72x256xbf16, #tpu.memory_space<vmem>>, vector<4x256xbf16>
    tpu.vector_store %arg14[%c20, %c0_22], %75 {strides = array<i32>} : memref<72x256xbf16, #tpu.memory_space<vmem>>, vector<4x256xbf16>,
    %c1_i32_23 = arith.constant 1 : i32
    %77 = tpu.dynamic_rotate %58 by %c1_i32_23 dim 1 : vector<4x256xf32>, i32 -> vector<4x256xf32>
    %78 = vector.extract_strided_slice %3 {offsets = [3, 0], sizes = [1, 256], strides = [1, 1]} : vector<9x256xf32> to vector<1x256xf32>
    %79 = vector.broadcast %78 : vector<1x256xf32> to vector<4x256xf32>
    %80 = arith.mulf %77, %79 : vector<4x256xf32>
    %81 = arith.truncf %80 : vector<4x256xf32> to vector<4x256xbf16>
    %c28 = arith.constant 28 : index
    %c0_24 = arith.constant 0 : index
    %82 = vector.load %arg14[%c28, %c0_24] : memref<72x256xbf16, #tpu.memory_space<vmem>>, vector<4x256xbf16>
    tpu.vector_store %arg14[%c28, %c0_24], %81 {strides = array<i32>} : memref<72x256xbf16, #tpu.memory_space<vmem>>, vector<4x256xbf16>,
    %83 = vector.extract_strided_slice %3 {offsets = [4, 0], sizes = [1, 256], strides = [1, 1]} : vector<9x256xf32> to vector<1x256xf32>
    %84 = vector.broadcast %83 : vector<1x256xf32> to vector<4x256xf32>
    %85 = arith.mulf %58, %84 : vector<4x256xf32>
    %86 = arith.truncf %85 : vector<4x256xf32> to vector<4x256xbf16>
    %c36 = arith.constant 36 : index
    %c0_25 = arith.constant 0 : index
    %87 = vector.load %arg14[%c36, %c0_25] : memref<72x256xbf16, #tpu.memory_space<vmem>>, vector<4x256xbf16>
    tpu.vector_store %arg14[%c36, %c0_25], %86 {strides = array<i32>} : memref<72x256xbf16, #tpu.memory_space<vmem>>, vector<4x256xbf16>,
    %c255_i32_26 = arith.constant 255 : i32
    %88 = tpu.dynamic_rotate %58 by %c255_i32_26 dim 1 : vector<4x256xf32>, i32 -> vector<4x256xf32>
    %89 = vector.extract_strided_slice %3 {offsets = [5, 0], sizes = [1, 256], strides = [1, 1]} : vector<9x256xf32> to vector<1x256xf32>
    %90 = vector.broadcast %89 : vector<1x256xf32> to vector<4x256xf32>
    %91 = arith.mulf %88, %90 : vector<4x256xf32>
    %92 = arith.truncf %91 : vector<4x256xf32> to vector<4x256xbf16>
    %c44 = arith.constant 44 : index
    %c0_27 = arith.constant 0 : index
    %93 = vector.load %arg14[%c44, %c0_27] : memref<72x256xbf16, #tpu.memory_space<vmem>>, vector<4x256xbf16>
    tpu.vector_store %arg14[%c44, %c0_27], %92 {strides = array<i32>} : memref<72x256xbf16, #tpu.memory_space<vmem>>, vector<4x256xbf16>,
    %c241_i32_28 = arith.constant 241 : i32
    %94 = tpu.dynamic_rotate %58 by %c241_i32_28 dim 1 : vector<4x256xf32>, i32 -> vector<4x256xf32>
    %95 = vector.extract_strided_slice %3 {offsets = [6, 0], sizes = [1, 256], strides = [1, 1]} : vector<9x256xf32> to vector<1x256xf32>
    %96 = vector.broadcast %95 : vector<1x256xf32> to vector<4x256xf32>
    %97 = arith.mulf %94, %96 : vector<4x256xf32>
    %98 = arith.truncf %97 : vector<4x256xf32> to vector<4x256xbf16>
    %c52 = arith.constant 52 : index
    %c0_29 = arith.constant 0 : index
    %99 = vector.load %arg14[%c52, %c0_29] : memref<72x256xbf16, #tpu.memory_space<vmem>>, vector<4x256xbf16>
    tpu.vector_store %arg14[%c52, %c0_29], %98 {strides = array<i32>} : memref<72x256xbf16, #tpu.memory_space<vmem>>, vector<4x256xbf16>,
    %c240_i32_30 = arith.constant 240 : i32
    %100 = tpu.dynamic_rotate %58 by %c240_i32_30 dim 1 : vector<4x256xf32>, i32 -> vector<4x256xf32>
    %101 = vector.extract_strided_slice %3 {offsets = [7, 0], sizes = [1, 256], strides = [1, 1]} : vector<9x256xf32> to vector<1x256xf32>
    %102 = vector.broadcast %101 : vector<1x256xf32> to vector<4x256xf32>
    %103 = arith.mulf %100, %102 : vector<4x256xf32>
    %104 = arith.truncf %103 : vector<4x256xf32> to vector<4x256xbf16>
    %c60 = arith.constant 60 : index
    %c0_31 = arith.constant 0 : index
    %105 = vector.load %arg14[%c60, %c0_31] : memref<72x256xbf16, #tpu.memory_space<vmem>>, vector<4x256xbf16>
    tpu.vector_store %arg14[%c60, %c0_31], %104 {strides = array<i32>} : memref<72x256xbf16, #tpu.memory_space<vmem>>, vector<4x256xbf16>,
    %c239_i32_32 = arith.constant 239 : i32
    %106 = tpu.dynamic_rotate %58 by %c239_i32_32 dim 1 : vector<4x256xf32>, i32 -> vector<4x256xf32>
    %107 = vector.extract_strided_slice %3 {offsets = [8, 0], sizes = [1, 256], strides = [1, 1]} : vector<9x256xf32> to vector<1x256xf32>
    %108 = vector.broadcast %107 : vector<1x256xf32> to vector<4x256xf32>
    %109 = arith.mulf %106, %108 : vector<4x256xf32>
    %110 = arith.truncf %109 : vector<4x256xf32> to vector<4x256xbf16>
    %c68 = arith.constant 68 : index
    %c0_33 = arith.constant 0 : index
    %111 = vector.load %arg14[%c68, %c0_33] : memref<72x256xbf16, #tpu.memory_space<vmem>>, vector<4x256xbf16>
    tpu.vector_store %arg14[%c68, %c0_33], %110 {strides = array<i32>} : memref<72x256xbf16, #tpu.memory_space<vmem>>, vector<4x256xbf16>,
    %c0_34 = arith.constant 0 : index
    %c0_35 = arith.constant 0 : index
    %112 = vector.load %arg4[%c0_34, %c0_35] : memref<4x72xbf16, #tpu.memory_space<vmem>>, vector<4x72xbf16>
    %c0_36 = arith.constant 0 : index
    %c0_37 = arith.constant 0 : index
    %113 = vector.load %arg14[%c0_36, %c0_37] : memref<72x256xbf16, #tpu.memory_space<vmem>>, vector<72x256xbf16>
    %cst_38 = arith.constant dense<0.000000e+00> : vector<4x256xf32>
    %114 = tpu.matmul %112, %113, %cst_38 {dimension_numbers = #tpu.dot_dimension_numbers<[1], [0], [0], [1], [0, 0, 1, 1], [], []>} : vector<4x72xbf16>, vector<72x256xbf16>, vector<4x256xf32> -> vector<4x256xf32>
    %c0_39 = arith.constant 0 : index
    %c0_40 = arith.constant 0 : index
    %115 = vector.load %arg5[%c0_39, %c0_40] : memref<4x1xf32, #tpu.memory_space<vmem>>, vector<4x1xf32>
    %116 = vector.broadcast %115 : vector<4x1xf32> to vector<4x256xf32>
    %117 = arith.addf %114, %116 : vector<4x256xf32>
    %c0_41 = arith.constant 0 : index
    %c0_42 = arith.constant 0 : index
    %118 = vector.load %arg13[%c0_41, %c0_42] : memref<8x256xf32, #tpu.memory_space<vmem>>, vector<4x256xf32>
    tpu.vector_store %arg13[%c0_41, %c0_42], %117 {strides = array<i32>} : memref<8x256xf32, #tpu.memory_space<vmem>>, vector<4x256xf32>,
    %c4_43 = arith.constant 4 : index
    %c0_44 = arith.constant 0 : index
    %119 = vector.load %arg0[%c4_43, %c0_44] : memref<8x256xf32, #tpu.memory_space<vmem>>, vector<4x256xf32>
    %c17_i32_45 = arith.constant 17 : i32
    %120 = tpu.dynamic_rotate %119 by %c17_i32_45 dim 1 : vector<4x256xf32>, i32 -> vector<4x256xf32>
    %121 = vector.extract_strided_slice %3 {offsets = [0, 0], sizes = [1, 256], strides = [1, 1]} : vector<9x256xf32> to vector<1x256xf32>
    %122 = vector.broadcast %121 : vector<1x256xf32> to vector<4x256xf32>
    %123 = arith.mulf %120, %122 : vector<4x256xf32>
    %124 = arith.truncf %123 : vector<4x256xf32> to vector<4x256xbf16>
    %c0_46 = arith.constant 0 : index
    %c0_47 = arith.constant 0 : index
    %125 = vector.load %arg14[%c0_46, %c0_47] : memref<72x256xbf16, #tpu.memory_space<vmem>>, vector<4x256xbf16>
    tpu.vector_store %arg14[%c0_46, %c0_47], %124 {strides = array<i32>} : memref<72x256xbf16, #tpu.memory_space<vmem>>, vector<4x256xbf16>,
    %c16_i32_48 = arith.constant 16 : i32
    %126 = tpu.dynamic_rotate %119 by %c16_i32_48 dim 1 : vector<4x256xf32>, i32 -> vector<4x256xf32>
    %127 = vector.extract_strided_slice %3 {offsets = [1, 0], sizes = [1, 256], strides = [1, 1]} : vector<9x256xf32> to vector<1x256xf32>
    %128 = vector.broadcast %127 : vector<1x256xf32> to vector<4x256xf32>
    %129 = arith.mulf %126, %128 : vector<4x256xf32>
    %130 = arith.truncf %129 : vector<4x256xf32> to vector<4x256xbf16>
    %c8_49 = arith.constant 8 : index
    %c0_50 = arith.constant 0 : index
    %131 = vector.load %arg14[%c8_49, %c0_50] : memref<72x256xbf16, #tpu.memory_space<vmem>>, vector<4x256xbf16>
    tpu.vector_store %arg14[%c8_49, %c0_50], %130 {strides = array<i32>} : memref<72x256xbf16, #tpu.memory_space<vmem>>, vector<4x256xbf16>,
    %c15_i32_51 = arith.constant 15 : i32
    %132 = tpu.dynamic_rotate %119 by %c15_i32_51 dim 1 : vector<4x256xf32>, i32 -> vector<4x256xf32>
    %133 = vector.extract_strided_slice %3 {offsets = [2, 0], sizes = [1, 256], strides = [1, 1]} : vector<9x256xf32> to vector<1x256xf32>
    %134 = vector.broadcast %133 : vector<1x256xf32> to vector<4x256xf32>
    %135 = arith.mulf %132, %134 : vector<4x256xf32>
    %136 = arith.truncf %135 : vector<4x256xf32> to vector<4x256xbf16>
    %c16_52 = arith.constant 16 : index
    %c0_53 = arith.constant 0 : index
    %137 = vector.load %arg14[%c16_52, %c0_53] : memref<72x256xbf16, #tpu.memory_space<vmem>>, vector<4x256xbf16>
    tpu.vector_store %arg14[%c16_52, %c0_53], %136 {strides = array<i32>} : memref<72x256xbf16, #tpu.memory_space<vmem>>, vector<4x256xbf16>,
    %c1_i32_54 = arith.constant 1 : i32
    %138 = tpu.dynamic_rotate %119 by %c1_i32_54 dim 1 : vector<4x256xf32>, i32 -> vector<4x256xf32>
    %139 = vector.extract_strided_slice %3 {offsets = [3, 0], sizes = [1, 256], strides = [1, 1]} : vector<9x256xf32> to vector<1x256xf32>
    %140 = vector.broadcast %139 : vector<1x256xf32> to vector<4x256xf32>
    %141 = arith.mulf %138, %140 : vector<4x256xf32>
    %142 = arith.truncf %141 : vector<4x256xf32> to vector<4x256xbf16>
    %c24_55 = arith.constant 24 : index
    %c0_56 = arith.constant 0 : index
    %143 = vector.load %arg14[%c24_55, %c0_56] : memref<72x256xbf16, #tpu.memory_space<vmem>>, vector<4x256xbf16>
    tpu.vector_store %arg14[%c24_55, %c0_56], %142 {strides = array<i32>} : memref<72x256xbf16, #tpu.memory_space<vmem>>, vector<4x256xbf16>,
    %144 = vector.extract_strided_slice %3 {offsets = [4, 0], sizes = [1, 256], strides = [1, 1]} : vector<9x256xf32> to vector<1x256xf32>
    %145 = vector.broadcast %144 : vector<1x256xf32> to vector<4x256xf32>
    %146 = arith.mulf %119, %145 : vector<4x256xf32>
    %147 = arith.truncf %146 : vector<4x256xf32> to vector<4x256xbf16>
    %c32_57 = arith.constant 32 : index
    %c0_58 = arith.constant 0 : index
    %148 = vector.load %arg14[%c32_57, %c0_58] : memref<72x256xbf16, #tpu.memory_space<vmem>>, vector<4x256xbf16>
    tpu.vector_store %arg14[%c32_57, %c0_58], %147 {strides = array<i32>} : memref<72x256xbf16, #tpu.memory_space<vmem>>, vector<4x256xbf16>,
    %c255_i32_59 = arith.constant 255 : i32
    %149 = tpu.dynamic_rotate %119 by %c255_i32_59 dim 1 : vector<4x256xf32>, i32 -> vector<4x256xf32>
    %150 = vector.extract_strided_slice %3 {offsets = [5, 0], sizes = [1, 256], strides = [1, 1]} : vector<9x256xf32> to vector<1x256xf32>
    %151 = vector.broadcast %150 : vector<1x256xf32> to vector<4x256xf32>
    %152 = arith.mulf %149, %151 : vector<4x256xf32>
    %153 = arith.truncf %152 : vector<4x256xf32> to vector<4x256xbf16>
    %c40_60 = arith.constant 40 : index
    %c0_61 = arith.constant 0 : index
    %154 = vector.load %arg14[%c40_60, %c0_61] : memref<72x256xbf16, #tpu.memory_space<vmem>>, vector<4x256xbf16>
    tpu.vector_store %arg14[%c40_60, %c0_61], %153 {strides = array<i32>} : memref<72x256xbf16, #tpu.memory_space<vmem>>, vector<4x256xbf16>,
    %c241_i32_62 = arith.constant 241 : i32
    %155 = tpu.dynamic_rotate %119 by %c241_i32_62 dim 1 : vector<4x256xf32>, i32 -> vector<4x256xf32>
    %156 = vector.extract_strided_slice %3 {offsets = [6, 0], sizes = [1, 256], strides = [1, 1]} : vector<9x256xf32> to vector<1x256xf32>
    %157 = vector.broadcast %156 : vector<1x256xf32> to vector<4x256xf32>
    %158 = arith.mulf %155, %157 : vector<4x256xf32>
    %159 = arith.truncf %158 : vector<4x256xf32> to vector<4x256xbf16>
    %c48_63 = arith.constant 48 : index
    %c0_64 = arith.constant 0 : index
    %160 = vector.load %arg14[%c48_63, %c0_64] : memref<72x256xbf16, #tpu.memory_space<vmem>>, vector<4x256xbf16>
    tpu.vector_store %arg14[%c48_63, %c0_64], %159 {strides = array<i32>} : memref<72x256xbf16, #tpu.memory_space<vmem>>, vector<4x256xbf16>,
    %c240_i32_65 = arith.constant 240 : i32
    %161 = tpu.dynamic_rotate %119 by %c240_i32_65 dim 1 : vector<4x256xf32>, i32 -> vector<4x256xf32>
    %162 = vector.extract_strided_slice %3 {offsets = [7, 0], sizes = [1, 256], strides = [1, 1]} : vector<9x256xf32> to vector<1x256xf32>
    %163 = vector.broadcast %162 : vector<1x256xf32> to vector<4x256xf32>
    %164 = arith.mulf %161, %163 : vector<4x256xf32>
    %165 = arith.truncf %164 : vector<4x256xf32> to vector<4x256xbf16>
    %c56_66 = arith.constant 56 : index
    %c0_67 = arith.constant 0 : index
    %166 = vector.load %arg14[%c56_66, %c0_67] : memref<72x256xbf16, #tpu.memory_space<vmem>>, vector<4x256xbf16>
    tpu.vector_store %arg14[%c56_66, %c0_67], %165 {strides = array<i32>} : memref<72x256xbf16, #tpu.memory_space<vmem>>, vector<4x256xbf16>,
    %c239_i32_68 = arith.constant 239 : i32
    %167 = tpu.dynamic_rotate %119 by %c239_i32_68 dim 1 : vector<4x256xf32>, i32 -> vector<4x256xf32>
    %168 = vector.extract_strided_slice %3 {offsets = [8, 0], sizes = [1, 256], strides = [1, 1]} : vector<9x256xf32> to vector<1x256xf32>
    %169 = vector.broadcast %168 : vector<1x256xf32> to vector<4x256xf32>
    %170 = arith.mulf %167, %169 : vector<4x256xf32>
    %171 = arith.truncf %170 : vector<4x256xf32> to vector<4x256xbf16>
    %c64_69 = arith.constant 64 : index
    %c0_70 = arith.constant 0 : index
    %172 = vector.load %arg14[%c64_69, %c0_70] : memref<72x256xbf16, #tpu.memory_space<vmem>>, vector<4x256xbf16>
    tpu.vector_store %arg14[%c64_69, %c0_70], %171 {strides = array<i32>} : memref<72x256xbf16, #tpu.memory_space<vmem>>, vector<4x256xbf16>,
    %173 = vector.extract_strided_slice %2 {offsets = [4, 0], sizes = [4, 256], strides = [1, 1]} : vector<8x256xf32> to vector<4x256xf32>
    %c17_i32_71 = arith.constant 17 : i32
    %174 = tpu.dynamic_rotate %173 by %c17_i32_71 dim 1 : vector<4x256xf32>, i32 -> vector<4x256xf32>
    %175 = vector.extract_strided_slice %3 {offsets = [0, 0], sizes = [1, 256], strides = [1, 1]} : vector<9x256xf32> to vector<1x256xf32>
    %176 = vector.broadcast %175 : vector<1x256xf32> to vector<4x256xf32>
    %177 = arith.mulf %174, %176 : vector<4x256xf32>
    %178 = arith.truncf %177 : vector<4x256xf32> to vector<4x256xbf16>
    %c4_72 = arith.constant 4 : index
    %c0_73 = arith.constant 0 : index
    %179 = vector.load %arg14[%c4_72, %c0_73] : memref<72x256xbf16, #tpu.memory_space<vmem>>, vector<4x256xbf16>
    tpu.vector_store %arg14[%c4_72, %c0_73], %178 {strides = array<i32>} : memref<72x256xbf16, #tpu.memory_space<vmem>>, vector<4x256xbf16>,
    %c16_i32_74 = arith.constant 16 : i32
    %180 = tpu.dynamic_rotate %173 by %c16_i32_74 dim 1 : vector<4x256xf32>, i32 -> vector<4x256xf32>
    %181 = vector.extract_strided_slice %3 {offsets = [1, 0], sizes = [1, 256], strides = [1, 1]} : vector<9x256xf32> to vector<1x256xf32>
    %182 = vector.broadcast %181 : vector<1x256xf32> to vector<4x256xf32>
    %183 = arith.mulf %180, %182 : vector<4x256xf32>
    %184 = arith.truncf %183 : vector<4x256xf32> to vector<4x256xbf16>
    %c12_75 = arith.constant 12 : index
    %c0_76 = arith.constant 0 : index
    %185 = vector.load %arg14[%c12_75, %c0_76] : memref<72x256xbf16, #tpu.memory_space<vmem>>, vector<4x256xbf16>
    tpu.vector_store %arg14[%c12_75, %c0_76], %184 {strides = array<i32>} : memref<72x256xbf16, #tpu.memory_space<vmem>>, vector<4x256xbf16>,
    %c15_i32_77 = arith.constant 15 : i32
    %186 = tpu.dynamic_rotate %173 by %c15_i32_77 dim 1 : vector<4x256xf32>, i32 -> vector<4x256xf32>
    %187 = vector.extract_strided_slice %3 {offsets = [2, 0], sizes = [1, 256], strides = [1, 1]} : vector<9x256xf32> to vector<1x256xf32>
    %188 = vector.broadcast %187 : vector<1x256xf32> to vector<4x256xf32>
    %189 = arith.mulf %186, %188 : vector<4x256xf32>
    %190 = arith.truncf %189 : vector<4x256xf32> to vector<4x256xbf16>
    %c20_78 = arith.constant 20 : index
    %c0_79 = arith.constant 0 : index
    %191 = vector.load %arg14[%c20_78, %c0_79] : memref<72x256xbf16, #tpu.memory_space<vmem>>, vector<4x256xbf16>
    tpu.vector_store %arg14[%c20_78, %c0_79], %190 {strides = array<i32>} : memref<72x256xbf16, #tpu.memory_space<vmem>>, vector<4x256xbf16>,
    %c1_i32_80 = arith.constant 1 : i32
    %192 = tpu.dynamic_rotate %173 by %c1_i32_80 dim 1 : vector<4x256xf32>, i32 -> vector<4x256xf32>
    %193 = vector.extract_strided_slice %3 {offsets = [3, 0], sizes = [1, 256], strides = [1, 1]} : vector<9x256xf32> to vector<1x256xf32>
    %194 = vector.broadcast %193 : vector<1x256xf32> to vector<4x256xf32>
    %195 = arith.mulf %192, %194 : vector<4x256xf32>
    %196 = arith.truncf %195 : vector<4x256xf32> to vector<4x256xbf16>
    %c28_81 = arith.constant 28 : index
    %c0_82 = arith.constant 0 : index
    %197 = vector.load %arg14[%c28_81, %c0_82] : memref<72x256xbf16, #tpu.memory_space<vmem>>, vector<4x256xbf16>
    tpu.vector_store %arg14[%c28_81, %c0_82], %196 {strides = array<i32>} : memref<72x256xbf16, #tpu.memory_space<vmem>>, vector<4x256xbf16>,
    %198 = vector.extract_strided_slice %3 {offsets = [4, 0], sizes = [1, 256], strides = [1, 1]} : vector<9x256xf32> to vector<1x256xf32>
    %199 = vector.broadcast %198 : vector<1x256xf32> to vector<4x256xf32>
    %200 = arith.mulf %173, %199 : vector<4x256xf32>
    %201 = arith.truncf %200 : vector<4x256xf32> to vector<4x256xbf16>
    %c36_83 = arith.constant 36 : index
    %c0_84 = arith.constant 0 : index
    %202 = vector.load %arg14[%c36_83, %c0_84] : memref<72x256xbf16, #tpu.memory_space<vmem>>, vector<4x256xbf16>
    tpu.vector_store %arg14[%c36_83, %c0_84], %201 {strides = array<i32>} : memref<72x256xbf16, #tpu.memory_space<vmem>>, vector<4x256xbf16>,
    %c255_i32_85 = arith.constant 255 : i32
    %203 = tpu.dynamic_rotate %173 by %c255_i32_85 dim 1 : vector<4x256xf32>, i32 -> vector<4x256xf32>
    %204 = vector.extract_strided_slice %3 {offsets = [5, 0], sizes = [1, 256], strides = [1, 1]} : vector<9x256xf32> to vector<1x256xf32>
    %205 = vector.broadcast %204 : vector<1x256xf32> to vector<4x256xf32>
    %206 = arith.mulf %203, %205 : vector<4x256xf32>
    %207 = arith.truncf %206 : vector<4x256xf32> to vector<4x256xbf16>
    %c44_86 = arith.constant 44 : index
    %c0_87 = arith.constant 0 : index
    %208 = vector.load %arg14[%c44_86, %c0_87] : memref<72x256xbf16, #tpu.memory_space<vmem>>, vector<4x256xbf16>
    tpu.vector_store %arg14[%c44_86, %c0_87], %207 {strides = array<i32>} : memref<72x256xbf16, #tpu.memory_space<vmem>>, vector<4x256xbf16>,
    %c241_i32_88 = arith.constant 241 : i32
    %209 = tpu.dynamic_rotate %173 by %c241_i32_88 dim 1 : vector<4x256xf32>, i32 -> vector<4x256xf32>
    %210 = vector.extract_strided_slice %3 {offsets = [6, 0], sizes = [1, 256], strides = [1, 1]} : vector<9x256xf32> to vector<1x256xf32>
    %211 = vector.broadcast %210 : vector<1x256xf32> to vector<4x256xf32>
    %212 = arith.mulf %209, %211 : vector<4x256xf32>
    %213 = arith.truncf %212 : vector<4x256xf32> to vector<4x256xbf16>
    %c52_89 = arith.constant 52 : index
    %c0_90 = arith.constant 0 : index
    %214 = vector.load %arg14[%c52_89, %c0_90] : memref<72x256xbf16, #tpu.memory_space<vmem>>, vector<4x256xbf16>
    tpu.vector_store %arg14[%c52_89, %c0_90], %213 {strides = array<i32>} : memref<72x256xbf16, #tpu.memory_space<vmem>>, vector<4x256xbf16>,
    %c240_i32_91 = arith.constant 240 : i32
    %215 = tpu.dynamic_rotate %173 by %c240_i32_91 dim 1 : vector<4x256xf32>, i32 -> vector<4x256xf32>
    %216 = vector.extract_strided_slice %3 {offsets = [7, 0], sizes = [1, 256], strides = [1, 1]} : vector<9x256xf32> to vector<1x256xf32>
    %217 = vector.broadcast %216 : vector<1x256xf32> to vector<4x256xf32>
    %218 = arith.mulf %215, %217 : vector<4x256xf32>
    %219 = arith.truncf %218 : vector<4x256xf32> to vector<4x256xbf16>
    %c60_92 = arith.constant 60 : index
    %c0_93 = arith.constant 0 : index
    %220 = vector.load %arg14[%c60_92, %c0_93] : memref<72x256xbf16, #tpu.memory_space<vmem>>, vector<4x256xbf16>
    tpu.vector_store %arg14[%c60_92, %c0_93], %219 {strides = array<i32>} : memref<72x256xbf16, #tpu.memory_space<vmem>>, vector<4x256xbf16>,
    %c239_i32_94 = arith.constant 239 : i32
    %221 = tpu.dynamic_rotate %173 by %c239_i32_94 dim 1 : vector<4x256xf32>, i32 -> vector<4x256xf32>
    %222 = vector.extract_strided_slice %3 {offsets = [8, 0], sizes = [1, 256], strides = [1, 1]} : vector<9x256xf32> to vector<1x256xf32>
    %223 = vector.broadcast %222 : vector<1x256xf32> to vector<4x256xf32>
    %224 = arith.mulf %221, %223 : vector<4x256xf32>
    %225 = arith.truncf %224 : vector<4x256xf32> to vector<4x256xbf16>
    %c68_95 = arith.constant 68 : index
    %c0_96 = arith.constant 0 : index
    %226 = vector.load %arg14[%c68_95, %c0_96] : memref<72x256xbf16, #tpu.memory_space<vmem>>, vector<4x256xbf16>
    tpu.vector_store %arg14[%c68_95, %c0_96], %225 {strides = array<i32>} : memref<72x256xbf16, #tpu.memory_space<vmem>>, vector<4x256xbf16>,
    %c0_97 = arith.constant 0 : index
    %c0_98 = arith.constant 0 : index
    %227 = vector.load %arg4[%c0_97, %c0_98] : memref<4x72xbf16, #tpu.memory_space<vmem>>, vector<4x72xbf16>
    %c0_99 = arith.constant 0 : index
    %c0_100 = arith.constant 0 : index
    %228 = vector.load %arg14[%c0_99, %c0_100] : memref<72x256xbf16, #tpu.memory_space<vmem>>, vector<72x256xbf16>
    %cst_101 = arith.constant dense<0.000000e+00> : vector<4x256xf32>
    %229 = tpu.matmul %227, %228, %cst_101 {dimension_numbers = #tpu.dot_dimension_numbers<[1], [0], [0], [1], [0, 0, 1, 1], [], []>} : vector<4x72xbf16>, vector<72x256xbf16>, vector<4x256xf32> -> vector<4x256xf32>
    %c0_102 = arith.constant 0 : index
    %c0_103 = arith.constant 0 : index
    %230 = vector.load %arg5[%c0_102, %c0_103] : memref<4x1xf32, #tpu.memory_space<vmem>>, vector<4x1xf32>
    %231 = vector.broadcast %230 : vector<4x1xf32> to vector<4x256xf32>
    %232 = arith.addf %229, %231 : vector<4x256xf32>
    %c4_104 = arith.constant 4 : index
    %c0_105 = arith.constant 0 : index
    %233 = vector.load %arg13[%c4_104, %c0_105] : memref<8x256xf32, #tpu.memory_space<vmem>>, vector<4x256xf32>
    tpu.vector_store %arg13[%c4_104, %c0_105], %232 {strides = array<i32>} : memref<8x256xf32, #tpu.memory_space<vmem>>, vector<4x256xf32>,
    %c0_106 = arith.constant 0 : index
    %c0_107 = arith.constant 0 : index
    %234 = vector.load %arg6[%c0_106, %c0_107] : memref<4x1xf32, #tpu.memory_space<vmem>>, vector<4x1xf32>
    %c0_108 = arith.constant 0 : index
    %c0_109 = arith.constant 0 : index
    %235 = vector.load %arg7[%c0_108, %c0_109] : memref<4x1xf32, #tpu.memory_space<vmem>>, vector<4x1xf32>
    %cst_110 = arith.constant 0.000000e+00 : f32
    %236 = vector.broadcast %cst_110 : f32 to vector<4x1xf32>
    %cst_111 = arith.constant 0.000000e+00 : f32
    %237 = vector.broadcast %cst_111 : f32 to vector<4x1xf32>
    %c0_112 = arith.constant 0 : index
    %c0_113 = arith.constant 0 : index
    %238 = vector.load %arg13[%c0_112, %c0_113] : memref<8x256xf32, #tpu.memory_space<vmem>>, vector<4x256xf32>
    %cst_114 = arith.constant dense<0.000000e+00> : vector<4xf32>
    %239 = vector.multi_reduction <add>, %238, %cst_114 [1] : vector<4x256xf32> to vector<4xf32>
    %240 = vector.shape_cast %239 : vector<4xf32> to vector<4x1xf32>
    %241 = arith.addf %236, %240 : vector<4x1xf32>
    %242 = arith.mulf %238, %238 : vector<4x256xf32>
    %cst_115 = arith.constant dense<0.000000e+00> : vector<4xf32>
    %243 = vector.multi_reduction <add>, %242, %cst_115 [1] : vector<4x256xf32> to vector<4xf32>
    %244 = vector.shape_cast %243 : vector<4xf32> to vector<4x1xf32>
    %245 = arith.addf %237, %244 : vector<4x1xf32>
    %c4_116 = arith.constant 4 : index
    %c0_117 = arith.constant 0 : index
    %246 = vector.load %arg13[%c4_116, %c0_117] : memref<8x256xf32, #tpu.memory_space<vmem>>, vector<4x256xf32>
    %cst_118 = arith.constant dense<0.000000e+00> : vector<4xf32>
    %247 = vector.multi_reduction <add>, %246, %cst_118 [1] : vector<4x256xf32> to vector<4xf32>
    %248 = vector.shape_cast %247 : vector<4xf32> to vector<4x1xf32>
    %249 = arith.addf %241, %248 : vector<4x1xf32>
    %250 = arith.mulf %246, %246 : vector<4x256xf32>
    %cst_119 = arith.constant dense<0.000000e+00> : vector<4xf32>
    %251 = vector.multi_reduction <add>, %250, %cst_119 [1] : vector<4x256xf32> to vector<4xf32>
    %252 = vector.shape_cast %251 : vector<4xf32> to vector<4x1xf32>
    %253 = arith.addf %245, %252 : vector<4x1xf32>
    %cst_120 = arith.constant 0.001953125 : f32
    %254 = vector.broadcast %cst_120 : f32 to vector<4x1xf32>
    %255 = arith.mulf %249, %254 : vector<4x1xf32>
    %cst_121 = arith.constant 0.001953125 : f32
    %256 = vector.broadcast %cst_121 : f32 to vector<4x1xf32>
    %257 = arith.mulf %253, %256 : vector<4x1xf32>
    %258 = arith.mulf %255, %255 : vector<4x1xf32>
    %259 = arith.subf %257, %258 : vector<4x1xf32>
    %cst_122 = arith.constant 0.000000e+00 : f32
    %260 = vector.broadcast %cst_122 : f32 to vector<4x1xf32>
    %261 = arith.maximumf %259, %260 : vector<4x1xf32>
    %cst_123 = arith.constant 9.99999974E-6 : f32
    %262 = vector.broadcast %cst_123 : f32 to vector<4x1xf32>
    %263 = arith.addf %261, %262 : vector<4x1xf32>
    %264 = math.rsqrt %263 : vector<4x1xf32>
    %265 = arith.mulf %234, %264 : vector<4x1xf32>
    %266 = arith.mulf %255, %265 : vector<4x1xf32>
    %267 = arith.subf %235, %266 : vector<4x1xf32>
    %c0_124 = arith.constant 0 : index
    %c0_125 = arith.constant 0 : index
    %268 = vector.load %arg13[%c0_124, %c0_125] : memref<8x256xf32, #tpu.memory_space<vmem>>, vector<4x256xf32>
    %269 = vector.broadcast %265 : vector<4x1xf32> to vector<4x256xf32>
    %270 = arith.mulf %268, %269 : vector<4x256xf32>
    %271 = vector.broadcast %267 : vector<4x1xf32> to vector<4x256xf32>
    %272 = arith.addf %270, %271 : vector<4x256xf32>
    %cst_126 = arith.constant 0.000000e+00 : f32
    %273 = vector.broadcast %cst_126 : f32 to vector<4x256xf32>
    %274 = arith.maximumf %272, %273 : vector<4x256xf32>
    %c0_127 = arith.constant 0 : index
    %c0_128 = arith.constant 0 : index
    %275 = vector.load %arg13[%c0_127, %c0_128] : memref<8x256xf32, #tpu.memory_space<vmem>>, vector<4x256xf32>
    tpu.vector_store %arg13[%c0_127, %c0_128], %274 {strides = array<i32>} : memref<8x256xf32, #tpu.memory_space<vmem>>, vector<4x256xf32>,
    %c4_129 = arith.constant 4 : index
    %c0_130 = arith.constant 0 : index
    %276 = vector.load %arg13[%c4_129, %c0_130] : memref<8x256xf32, #tpu.memory_space<vmem>>, vector<4x256xf32>
    %277 = vector.broadcast %265 : vector<4x1xf32> to vector<4x256xf32>
    %278 = arith.mulf %276, %277 : vector<4x256xf32>
    %279 = vector.broadcast %267 : vector<4x1xf32> to vector<4x256xf32>
    %280 = arith.addf %278, %279 : vector<4x256xf32>
    %cst_131 = arith.constant 0.000000e+00 : f32
    %281 = vector.broadcast %cst_131 : f32 to vector<4x256xf32>
    %282 = arith.maximumf %280, %281 : vector<4x256xf32>
    %c4_132 = arith.constant 4 : index
    %c0_133 = arith.constant 0 : index
    %283 = vector.load %arg13[%c4_132, %c0_133] : memref<8x256xf32, #tpu.memory_space<vmem>>, vector<4x256xf32>
    tpu.vector_store %arg13[%c4_132, %c0_133], %282 {strides = array<i32>} : memref<8x256xf32, #tpu.memory_space<vmem>>, vector<4x256xf32>,
    %c0_134 = arith.constant 0 : index
    %c0_135 = arith.constant 0 : index
    %284 = vector.load %arg13[%c0_134, %c0_135] : memref<8x256xf32, #tpu.memory_space<vmem>>, vector<4x256xf32>
    %c17_i32_136 = arith.constant 17 : i32
    %285 = tpu.dynamic_rotate %284 by %c17_i32_136 dim 1 : vector<4x256xf32>, i32 -> vector<4x256xf32>
    %286 = vector.extract_strided_slice %3 {offsets = [0, 0], sizes = [1, 256], strides = [1, 1]} : vector<9x256xf32> to vector<1x256xf32>
    %287 = vector.broadcast %286 : vector<1x256xf32> to vector<4x256xf32>
    %288 = arith.mulf %285, %287 : vector<4x256xf32>
    %289 = arith.truncf %288 : vector<4x256xf32> to vector<4x256xbf16>
    %c0_137 = arith.constant 0 : index
    %c0_138 = arith.constant 0 : index
    %290 = vector.load %arg15[%c0_137, %c0_138] : memref<36x256xbf16, #tpu.memory_space<vmem>>, vector<4x256xbf16>
    tpu.vector_store %arg15[%c0_137, %c0_138], %289 {strides = array<i32>} : memref<36x256xbf16, #tpu.memory_space<vmem>>, vector<4x256xbf16>,
    %c16_i32_139 = arith.constant 16 : i32
    %291 = tpu.dynamic_rotate %284 by %c16_i32_139 dim 1 : vector<4x256xf32>, i32 -> vector<4x256xf32>
    %292 = vector.extract_strided_slice %3 {offsets = [1, 0], sizes = [1, 256], strides = [1, 1]} : vector<9x256xf32> to vector<1x256xf32>
    %293 = vector.broadcast %292 : vector<1x256xf32> to vector<4x256xf32>
    %294 = arith.mulf %291, %293 : vector<4x256xf32>
    %295 = arith.truncf %294 : vector<4x256xf32> to vector<4x256xbf16>
    %c4_140 = arith.constant 4 : index
    %c0_141 = arith.constant 0 : index
    %296 = vector.load %arg15[%c4_140, %c0_141] : memref<36x256xbf16, #tpu.memory_space<vmem>>, vector<4x256xbf16>
    tpu.vector_store %arg15[%c4_140, %c0_141], %295 {strides = array<i32>} : memref<36x256xbf16, #tpu.memory_space<vmem>>, vector<4x256xbf16>,
    %c15_i32_142 = arith.constant 15 : i32
    %297 = tpu.dynamic_rotate %284 by %c15_i32_142 dim 1 : vector<4x256xf32>, i32 -> vector<4x256xf32>
    %298 = vector.extract_strided_slice %3 {offsets = [2, 0], sizes = [1, 256], strides = [1, 1]} : vector<9x256xf32> to vector<1x256xf32>
    %299 = vector.broadcast %298 : vector<1x256xf32> to vector<4x256xf32>
    %300 = arith.mulf %297, %299 : vector<4x256xf32>
    %301 = arith.truncf %300 : vector<4x256xf32> to vector<4x256xbf16>
    %c8_143 = arith.constant 8 : index
    %c0_144 = arith.constant 0 : index
    %302 = vector.load %arg15[%c8_143, %c0_144] : memref<36x256xbf16, #tpu.memory_space<vmem>>, vector<4x256xbf16>
    tpu.vector_store %arg15[%c8_143, %c0_144], %301 {strides = array<i32>} : memref<36x256xbf16, #tpu.memory_space<vmem>>, vector<4x256xbf16>,
    %c1_i32_145 = arith.constant 1 : i32
    %303 = tpu.dynamic_rotate %284 by %c1_i32_145 dim 1 : vector<4x256xf32>, i32 -> vector<4x256xf32>
    %304 = vector.extract_strided_slice %3 {offsets = [3, 0], sizes = [1, 256], strides = [1, 1]} : vector<9x256xf32> to vector<1x256xf32>
    %305 = vector.broadcast %304 : vector<1x256xf32> to vector<4x256xf32>
    %306 = arith.mulf %303, %305 : vector<4x256xf32>
    %307 = arith.truncf %306 : vector<4x256xf32> to vector<4x256xbf16>
    %c12_146 = arith.constant 12 : index
    %c0_147 = arith.constant 0 : index
    %308 = vector.load %arg15[%c12_146, %c0_147] : memref<36x256xbf16, #tpu.memory_space<vmem>>, vector<4x256xbf16>
    tpu.vector_store %arg15[%c12_146, %c0_147], %307 {strides = array<i32>} : memref<36x256xbf16, #tpu.memory_space<vmem>>, vector<4x256xbf16>,
    %309 = vector.extract_strided_slice %3 {offsets = [4, 0], sizes = [1, 256], strides = [1, 1]} : vector<9x256xf32> to vector<1x256xf32>
    %310 = vector.broadcast %309 : vector<1x256xf32> to vector<4x256xf32>
    %311 = arith.mulf %284, %310 : vector<4x256xf32>
    %312 = arith.truncf %311 : vector<4x256xf32> to vector<4x256xbf16>
    %c16_148 = arith.constant 16 : index
    %c0_149 = arith.constant 0 : index
    %313 = vector.load %arg15[%c16_148, %c0_149] : memref<36x256xbf16, #tpu.memory_space<vmem>>, vector<4x256xbf16>
    tpu.vector_store %arg15[%c16_148, %c0_149], %312 {strides = array<i32>} : memref<36x256xbf16, #tpu.memory_space<vmem>>, vector<4x256xbf16>,
    %c255_i32_150 = arith.constant 255 : i32
    %314 = tpu.dynamic_rotate %284 by %c255_i32_150 dim 1 : vector<4x256xf32>, i32 -> vector<4x256xf32>
    %315 = vector.extract_strided_slice %3 {offsets = [5, 0], sizes = [1, 256], strides = [1, 1]} : vector<9x256xf32> to vector<1x256xf32>
    %316 = vector.broadcast %315 : vector<1x256xf32> to vector<4x256xf32>
    %317 = arith.mulf %314, %316 : vector<4x256xf32>
    %318 = arith.truncf %317 : vector<4x256xf32> to vector<4x256xbf16>
    %c20_151 = arith.constant 20 : index
    %c0_152 = arith.constant 0 : index
    %319 = vector.load %arg15[%c20_151, %c0_152] : memref<36x256xbf16, #tpu.memory_space<vmem>>, vector<4x256xbf16>
    tpu.vector_store %arg15[%c20_151, %c0_152], %318 {strides = array<i32>} : memref<36x256xbf16, #tpu.memory_space<vmem>>, vector<4x256xbf16>,
    %c241_i32_153 = arith.constant 241 : i32
    %320 = tpu.dynamic_rotate %284 by %c241_i32_153 dim 1 : vector<4x256xf32>, i32 -> vector<4x256xf32>
    %321 = vector.extract_strided_slice %3 {offsets = [6, 0], sizes = [1, 256], strides = [1, 1]} : vector<9x256xf32> to vector<1x256xf32>
    %322 = vector.broadcast %321 : vector<1x256xf32> to vector<4x256xf32>
    %323 = arith.mulf %320, %322 : vector<4x256xf32>
    %324 = arith.truncf %323 : vector<4x256xf32> to vector<4x256xbf16>
    %c24_154 = arith.constant 24 : index
    %c0_155 = arith.constant 0 : index
    %325 = vector.load %arg15[%c24_154, %c0_155] : memref<36x256xbf16, #tpu.memory_space<vmem>>, vector<4x256xbf16>
    tpu.vector_store %arg15[%c24_154, %c0_155], %324 {strides = array<i32>} : memref<36x256xbf16, #tpu.memory_space<vmem>>, vector<4x256xbf16>,
    %c240_i32_156 = arith.constant 240 : i32
    %326 = tpu.dynamic_rotate %284 by %c240_i32_156 dim 1 : vector<4x256xf32>, i32 -> vector<4x256xf32>
    %327 = vector.extract_strided_slice %3 {offsets = [7, 0], sizes = [1, 256], strides = [1, 1]} : vector<9x256xf32> to vector<1x256xf32>
    %328 = vector.broadcast %327 : vector<1x256xf32> to vector<4x256xf32>
    %329 = arith.mulf %326, %328 : vector<4x256xf32>
    %330 = arith.truncf %329 : vector<4x256xf32> to vector<4x256xbf16>
    %c28_157 = arith.constant 28 : index
    %c0_158 = arith.constant 0 : index
    %331 = vector.load %arg15[%c28_157, %c0_158] : memref<36x256xbf16, #tpu.memory_space<vmem>>, vector<4x256xbf16>
    tpu.vector_store %arg15[%c28_157, %c0_158], %330 {strides = array<i32>} : memref<36x256xbf16, #tpu.memory_space<vmem>>, vector<4x256xbf16>,
    %c239_i32_159 = arith.constant 239 : i32
    %332 = tpu.dynamic_rotate %284 by %c239_i32_159 dim 1 : vector<4x256xf32>, i32 -> vector<4x256xf32>
    %333 = vector.extract_strided_slice %3 {offsets = [8, 0], sizes = [1, 256], strides = [1, 1]} : vector<9x256xf32> to vector<1x256xf32>
    %334 = vector.broadcast %333 : vector<1x256xf32> to vector<4x256xf32>
    %335 = arith.mulf %332, %334 : vector<4x256xf32>
    %336 = arith.truncf %335 : vector<4x256xf32> to vector<4x256xbf16>
    %c32_160 = arith.constant 32 : index
    %c0_161 = arith.constant 0 : index
    %337 = vector.load %arg15[%c32_160, %c0_161] : memref<36x256xbf16, #tpu.memory_space<vmem>>, vector<4x256xbf16>
    tpu.vector_store %arg15[%c32_160, %c0_161], %336 {strides = array<i32>} : memref<36x256xbf16, #tpu.memory_space<vmem>>, vector<4x256xbf16>,
    %c0_162 = arith.constant 0 : index
    %c0_163 = arith.constant 0 : index
    %338 = vector.load %arg8[%c0_162, %c0_163] : memref<4x36xbf16, #tpu.memory_space<vmem>>, vector<4x36xbf16>
    %c0_164 = arith.constant 0 : index
    %c0_165 = arith.constant 0 : index
    %339 = vector.load %arg15[%c0_164, %c0_165] : memref<36x256xbf16, #tpu.memory_space<vmem>>, vector<36x256xbf16>
    %cst_166 = arith.constant dense<0.000000e+00> : vector<4x256xf32>
    %340 = tpu.matmul %338, %339, %cst_166 {dimension_numbers = #tpu.dot_dimension_numbers<[1], [0], [0], [1], [0, 0, 1, 1], [], []>} : vector<4x36xbf16>, vector<36x256xbf16>, vector<4x256xf32> -> vector<4x256xf32>
    %c0_167 = arith.constant 0 : index
    %c0_168 = arith.constant 0 : index
    %341 = vector.load %arg9[%c0_167, %c0_168] : memref<4x1xf32, #tpu.memory_space<vmem>>, vector<4x1xf32>
    %342 = vector.broadcast %341 : vector<4x1xf32> to vector<4x256xf32>
    %343 = arith.addf %340, %342 : vector<4x256xf32>
    %c0_169 = arith.constant 0 : index
    %c0_170 = arith.constant 0 : index
    %344 = vector.load %arg12[%c0_169, %c0_170] : memref<8x256xf32, #tpu.memory_space<vmem>>, vector<4x256xf32>
    tpu.vector_store %arg12[%c0_169, %c0_170], %343 {strides = array<i32>} : memref<8x256xf32, #tpu.memory_space<vmem>>, vector<4x256xf32>,
    %c4_171 = arith.constant 4 : index
    %c0_172 = arith.constant 0 : index
    %345 = vector.load %arg13[%c4_171, %c0_172] : memref<8x256xf32, #tpu.memory_space<vmem>>, vector<4x256xf32>
    %c17_i32_173 = arith.constant 17 : i32
    %346 = tpu.dynamic_rotate %345 by %c17_i32_173 dim 1 : vector<4x256xf32>, i32 -> vector<4x256xf32>
    %347 = vector.extract_strided_slice %3 {offsets = [0, 0], sizes = [1, 256], strides = [1, 1]} : vector<9x256xf32> to vector<1x256xf32>
    %348 = vector.broadcast %347 : vector<1x256xf32> to vector<4x256xf32>
    %349 = arith.mulf %346, %348 : vector<4x256xf32>
    %350 = arith.truncf %349 : vector<4x256xf32> to vector<4x256xbf16>
    %c0_174 = arith.constant 0 : index
    %c0_175 = arith.constant 0 : index
    %351 = vector.load %arg15[%c0_174, %c0_175] : memref<36x256xbf16, #tpu.memory_space<vmem>>, vector<4x256xbf16>
    tpu.vector_store %arg15[%c0_174, %c0_175], %350 {strides = array<i32>} : memref<36x256xbf16, #tpu.memory_space<vmem>>, vector<4x256xbf16>,
    %c16_i32_176 = arith.constant 16 : i32
    %352 = tpu.dynamic_rotate %345 by %c16_i32_176 dim 1 : vector<4x256xf32>, i32 -> vector<4x256xf32>
    %353 = vector.extract_strided_slice %3 {offsets = [1, 0], sizes = [1, 256], strides = [1, 1]} : vector<9x256xf32> to vector<1x256xf32>
    %354 = vector.broadcast %353 : vector<1x256xf32> to vector<4x256xf32>
    %355 = arith.mulf %352, %354 : vector<4x256xf32>
    %356 = arith.truncf %355 : vector<4x256xf32> to vector<4x256xbf16>
    %c4_177 = arith.constant 4 : index
    %c0_178 = arith.constant 0 : index
    %357 = vector.load %arg15[%c4_177, %c0_178] : memref<36x256xbf16, #tpu.memory_space<vmem>>, vector<4x256xbf16>
    tpu.vector_store %arg15[%c4_177, %c0_178], %356 {strides = array<i32>} : memref<36x256xbf16, #tpu.memory_space<vmem>>, vector<4x256xbf16>,
    %c15_i32_179 = arith.constant 15 : i32
    %358 = tpu.dynamic_rotate %345 by %c15_i32_179 dim 1 : vector<4x256xf32>, i32 -> vector<4x256xf32>
    %359 = vector.extract_strided_slice %3 {offsets = [2, 0], sizes = [1, 256], strides = [1, 1]} : vector<9x256xf32> to vector<1x256xf32>
    %360 = vector.broadcast %359 : vector<1x256xf32> to vector<4x256xf32>
    %361 = arith.mulf %358, %360 : vector<4x256xf32>
    %362 = arith.truncf %361 : vector<4x256xf32> to vector<4x256xbf16>
    %c8_180 = arith.constant 8 : index
    %c0_181 = arith.constant 0 : index
    %363 = vector.load %arg15[%c8_180, %c0_181] : memref<36x256xbf16, #tpu.memory_space<vmem>>, vector<4x256xbf16>
    tpu.vector_store %arg15[%c8_180, %c0_181], %362 {strides = array<i32>} : memref<36x256xbf16, #tpu.memory_space<vmem>>, vector<4x256xbf16>,
    %c1_i32_182 = arith.constant 1 : i32
    %364 = tpu.dynamic_rotate %345 by %c1_i32_182 dim 1 : vector<4x256xf32>, i32 -> vector<4x256xf32>
    %365 = vector.extract_strided_slice %3 {offsets = [3, 0], sizes = [1, 256], strides = [1, 1]} : vector<9x256xf32> to vector<1x256xf32>
    %366 = vector.broadcast %365 : vector<1x256xf32> to vector<4x256xf32>
    %367 = arith.mulf %364, %366 : vector<4x256xf32>
    %368 = arith.truncf %367 : vector<4x256xf32> to vector<4x256xbf16>
    %c12_183 = arith.constant 12 : index
    %c0_184 = arith.constant 0 : index
    %369 = vector.load %arg15[%c12_183, %c0_184] : memref<36x256xbf16, #tpu.memory_space<vmem>>, vector<4x256xbf16>
    tpu.vector_store %arg15[%c12_183, %c0_184], %368 {strides = array<i32>} : memref<36x256xbf16, #tpu.memory_space<vmem>>, vector<4x256xbf16>,
    %370 = vector.extract_strided_slice %3 {offsets = [4, 0], sizes = [1, 256], strides = [1, 1]} : vector<9x256xf32> to vector<1x256xf32>
    %371 = vector.broadcast %370 : vector<1x256xf32> to vector<4x256xf32>
    %372 = arith.mulf %345, %371 : vector<4x256xf32>
    %373 = arith.truncf %372 : vector<4x256xf32> to vector<4x256xbf16>
    %c16_185 = arith.constant 16 : index
    %c0_186 = arith.constant 0 : index
    %374 = vector.load %arg15[%c16_185, %c0_186] : memref<36x256xbf16, #tpu.memory_space<vmem>>, vector<4x256xbf16>
    tpu.vector_store %arg15[%c16_185, %c0_186], %373 {strides = array<i32>} : memref<36x256xbf16, #tpu.memory_space<vmem>>, vector<4x256xbf16>,
    %c255_i32_187 = arith.constant 255 : i32
    %375 = tpu.dynamic_rotate %345 by %c255_i32_187 dim 1 : vector<4x256xf32>, i32 -> vector<4x256xf32>
    %376 = vector.extract_strided_slice %3 {offsets = [5, 0], sizes = [1, 256], strides = [1, 1]} : vector<9x256xf32> to vector<1x256xf32>
    %377 = vector.broadcast %376 : vector<1x256xf32> to vector<4x256xf32>
    %378 = arith.mulf %375, %377 : vector<4x256xf32>
    %379 = arith.truncf %378 : vector<4x256xf32> to vector<4x256xbf16>
    %c20_188 = arith.constant 20 : index
    %c0_189 = arith.constant 0 : index
    %380 = vector.load %arg15[%c20_188, %c0_189] : memref<36x256xbf16, #tpu.memory_space<vmem>>, vector<4x256xbf16>
    tpu.vector_store %arg15[%c20_188, %c0_189], %379 {strides = array<i32>} : memref<36x256xbf16, #tpu.memory_space<vmem>>, vector<4x256xbf16>,
    %c241_i32_190 = arith.constant 241 : i32
    %381 = tpu.dynamic_rotate %345 by %c241_i32_190 dim 1 : vector<4x256xf32>, i32 -> vector<4x256xf32>
    %382 = vector.extract_strided_slice %3 {offsets = [6, 0], sizes = [1, 256], strides = [1, 1]} : vector<9x256xf32> to vector<1x256xf32>
    %383 = vector.broadcast %382 : vector<1x256xf32> to vector<4x256xf32>
    %384 = arith.mulf %381, %383 : vector<4x256xf32>
    %385 = arith.truncf %384 : vector<4x256xf32> to vector<4x256xbf16>
    %c24_191 = arith.constant 24 : index
    %c0_192 = arith.constant 0 : index
    %386 = vector.load %arg15[%c24_191, %c0_192] : memref<36x256xbf16, #tpu.memory_space<vmem>>, vector<4x256xbf16>
    tpu.vector_store %arg15[%c24_191, %c0_192], %385 {strides = array<i32>} : memref<36x256xbf16, #tpu.memory_space<vmem>>, vector<4x256xbf16>,
    %c240_i32_193 = arith.constant 240 : i32
    %387 = tpu.dynamic_rotate %345 by %c240_i32_193 dim 1 : vector<4x256xf32>, i32 -> vector<4x256xf32>
    %388 = vector.extract_strided_slice %3 {offsets = [7, 0], sizes = [1, 256], strides = [1, 1]} : vector<9x256xf32> to vector<1x256xf32>
    %389 = vector.broadcast %388 : vector<1x256xf32> to vector<4x256xf32>
    %390 = arith.mulf %387, %389 : vector<4x256xf32>
    %391 = arith.truncf %390 : vector<4x256xf32> to vector<4x256xbf16>
    %c28_194 = arith.constant 28 : index
    %c0_195 = arith.constant 0 : index
    %392 = vector.load %arg15[%c28_194, %c0_195] : memref<36x256xbf16, #tpu.memory_space<vmem>>, vector<4x256xbf16>
    tpu.vector_store %arg15[%c28_194, %c0_195], %391 {strides = array<i32>} : memref<36x256xbf16, #tpu.memory_space<vmem>>, vector<4x256xbf16>,
    %c239_i32_196 = arith.constant 239 : i32
    %393 = tpu.dynamic_rotate %345 by %c239_i32_196 dim 1 : vector<4x256xf32>, i32 -> vector<4x256xf32>
    %394 = vector.extract_strided_slice %3 {offsets = [8, 0], sizes = [1, 256], strides = [1, 1]} : vector<9x256xf32> to vector<1x256xf32>
    %395 = vector.broadcast %394 : vector<1x256xf32> to vector<4x256xf32>
    %396 = arith.mulf %393, %395 : vector<4x256xf32>
    %397 = arith.truncf %396 : vector<4x256xf32> to vector<4x256xbf16>
    %c32_197 = arith.constant 32 : index
    %c0_198 = arith.constant 0 : index
    %398 = vector.load %arg15[%c32_197, %c0_198] : memref<36x256xbf16, #tpu.memory_space<vmem>>, vector<4x256xbf16>
    tpu.vector_store %arg15[%c32_197, %c0_198], %397 {strides = array<i32>} : memref<36x256xbf16, #tpu.memory_space<vmem>>, vector<4x256xbf16>,
    %c0_199 = arith.constant 0 : index
    %c0_200 = arith.constant 0 : index
    %399 = vector.load %arg8[%c0_199, %c0_200] : memref<4x36xbf16, #tpu.memory_space<vmem>>, vector<4x36xbf16>
    %c0_201 = arith.constant 0 : index
    %c0_202 = arith.constant 0 : index
    %400 = vector.load %arg15[%c0_201, %c0_202] : memref<36x256xbf16, #tpu.memory_space<vmem>>, vector<36x256xbf16>
    %cst_203 = arith.constant dense<0.000000e+00> : vector<4x256xf32>
    %401 = tpu.matmul %399, %400, %cst_203 {dimension_numbers = #tpu.dot_dimension_numbers<[1], [0], [0], [1], [0, 0, 1, 1], [], []>} : vector<4x36xbf16>, vector<36x256xbf16>, vector<4x256xf32> -> vector<4x256xf32>
    %c0_204 = arith.constant 0 : index
    %c0_205 = arith.constant 0 : index
    %402 = vector.load %arg9[%c0_204, %c0_205] : memref<4x1xf32, #tpu.memory_space<vmem>>, vector<4x1xf32>
    %403 = vector.broadcast %402 : vector<4x1xf32> to vector<4x256xf32>
    %404 = arith.addf %401, %403 : vector<4x256xf32>
    %c4_206 = arith.constant 4 : index
    %c0_207 = arith.constant 0 : index
    %405 = vector.load %arg12[%c4_206, %c0_207] : memref<8x256xf32, #tpu.memory_space<vmem>>, vector<4x256xf32>
    tpu.vector_store %arg12[%c4_206, %c0_207], %404 {strides = array<i32>} : memref<8x256xf32, #tpu.memory_space<vmem>>, vector<4x256xf32>,
    %c0_208 = arith.constant 0 : index
    %c0_209 = arith.constant 0 : index
    %406 = vector.load %arg10[%c0_208, %c0_209] : memref<4x1xf32, #tpu.memory_space<vmem>>, vector<4x1xf32>
    %c0_210 = arith.constant 0 : index
    %c0_211 = arith.constant 0 : index
    %407 = vector.load %arg11[%c0_210, %c0_211] : memref<4x1xf32, #tpu.memory_space<vmem>>, vector<4x1xf32>
    %cst_212 = arith.constant 0.000000e+00 : f32
    %408 = vector.broadcast %cst_212 : f32 to vector<4x1xf32>
    %cst_213 = arith.constant 0.000000e+00 : f32
    %409 = vector.broadcast %cst_213 : f32 to vector<4x1xf32>
    %c0_214 = arith.constant 0 : index
    %c0_215 = arith.constant 0 : index
    %410 = vector.load %arg12[%c0_214, %c0_215] : memref<8x256xf32, #tpu.memory_space<vmem>>, vector<4x256xf32>
    %cst_216 = arith.constant dense<0.000000e+00> : vector<4xf32>
    %411 = vector.multi_reduction <add>, %410, %cst_216 [1] : vector<4x256xf32> to vector<4xf32>
    %412 = vector.shape_cast %411 : vector<4xf32> to vector<4x1xf32>
    %413 = arith.addf %408, %412 : vector<4x1xf32>
    %414 = arith.mulf %410, %410 : vector<4x256xf32>
    %cst_217 = arith.constant dense<0.000000e+00> : vector<4xf32>
    %415 = vector.multi_reduction <add>, %414, %cst_217 [1] : vector<4x256xf32> to vector<4xf32>
    %416 = vector.shape_cast %415 : vector<4xf32> to vector<4x1xf32>
    %417 = arith.addf %409, %416 : vector<4x1xf32>
    %c4_218 = arith.constant 4 : index
    %c0_219 = arith.constant 0 : index
    %418 = vector.load %arg12[%c4_218, %c0_219] : memref<8x256xf32, #tpu.memory_space<vmem>>, vector<4x256xf32>
    %cst_220 = arith.constant dense<0.000000e+00> : vector<4xf32>
    %419 = vector.multi_reduction <add>, %418, %cst_220 [1] : vector<4x256xf32> to vector<4xf32>
    %420 = vector.shape_cast %419 : vector<4xf32> to vector<4x1xf32>
    %421 = arith.addf %413, %420 : vector<4x1xf32>
    %422 = arith.mulf %418, %418 : vector<4x256xf32>
    %cst_221 = arith.constant dense<0.000000e+00> : vector<4xf32>
    %423 = vector.multi_reduction <add>, %422, %cst_221 [1] : vector<4x256xf32> to vector<4xf32>
    %424 = vector.shape_cast %423 : vector<4xf32> to vector<4x1xf32>
    %425 = arith.addf %417, %424 : vector<4x1xf32>
    %cst_222 = arith.constant 0.001953125 : f32
    %426 = vector.broadcast %cst_222 : f32 to vector<4x1xf32>
    %427 = arith.mulf %421, %426 : vector<4x1xf32>
    %cst_223 = arith.constant 0.001953125 : f32
    %428 = vector.broadcast %cst_223 : f32 to vector<4x1xf32>
    %429 = arith.mulf %425, %428 : vector<4x1xf32>
    %430 = arith.mulf %427, %427 : vector<4x1xf32>
    %431 = arith.subf %429, %430 : vector<4x1xf32>
    %cst_224 = arith.constant 0.000000e+00 : f32
    %432 = vector.broadcast %cst_224 : f32 to vector<4x1xf32>
    %433 = arith.maximumf %431, %432 : vector<4x1xf32>
    %cst_225 = arith.constant 9.99999974E-6 : f32
    %434 = vector.broadcast %cst_225 : f32 to vector<4x1xf32>
    %435 = arith.addf %433, %434 : vector<4x1xf32>
    %436 = math.rsqrt %435 : vector<4x1xf32>
    %437 = arith.mulf %406, %436 : vector<4x1xf32>
    %438 = arith.mulf %427, %437 : vector<4x1xf32>
    %439 = arith.subf %407, %438 : vector<4x1xf32>
    %c0_226 = arith.constant 0 : index
    %c0_227 = arith.constant 0 : index
    %440 = vector.load %arg12[%c0_226, %c0_227] : memref<8x256xf32, #tpu.memory_space<vmem>>, vector<4x256xf32>
    %441 = vector.broadcast %437 : vector<4x1xf32> to vector<4x256xf32>
    %442 = arith.mulf %440, %441 : vector<4x256xf32>
    %443 = vector.broadcast %439 : vector<4x1xf32> to vector<4x256xf32>
    %444 = arith.addf %442, %443 : vector<4x256xf32>
    %cst_228 = arith.constant 0.000000e+00 : f32
    %445 = vector.broadcast %cst_228 : f32 to vector<4x256xf32>
    %446 = arith.maximumf %444, %445 : vector<4x256xf32>
    %c0_229 = arith.constant 0 : index
    %c0_230 = arith.constant 0 : index
    %447 = vector.load %arg12[%c0_229, %c0_230] : memref<8x256xf32, #tpu.memory_space<vmem>>, vector<4x256xf32>
    tpu.vector_store %arg12[%c0_229, %c0_230], %446 {strides = array<i32>} : memref<8x256xf32, #tpu.memory_space<vmem>>, vector<4x256xf32>,
    %c4_231 = arith.constant 4 : index
    %c0_232 = arith.constant 0 : index
    %448 = vector.load %arg12[%c4_231, %c0_232] : memref<8x256xf32, #tpu.memory_space<vmem>>, vector<4x256xf32>
    %449 = vector.broadcast %437 : vector<4x1xf32> to vector<4x256xf32>
    %450 = arith.mulf %448, %449 : vector<4x256xf32>
    %451 = vector.broadcast %439 : vector<4x1xf32> to vector<4x256xf32>
    %452 = arith.addf %450, %451 : vector<4x256xf32>
    %cst_233 = arith.constant 0.000000e+00 : f32
    %453 = vector.broadcast %cst_233 : f32 to vector<4x256xf32>
    %454 = arith.maximumf %452, %453 : vector<4x256xf32>
    %c4_234 = arith.constant 4 : index
    %c0_235 = arith.constant 0 : index
    %455 = vector.load %arg12[%c4_234, %c0_235] : memref<8x256xf32, #tpu.memory_space<vmem>>, vector<4x256xf32>
    tpu.vector_store %arg12[%c4_234, %c0_235], %454 {strides = array<i32>} : memref<8x256xf32, #tpu.memory_space<vmem>>, vector<4x256xf32>,
    return
  }
}

</mosaic_0001>

<llo_original>
// kernel: up_forward.1
$region0: #{up_forward.1}
  #allocation0 [shape = 'u32[]', space=smem, size = 0x4, offset = 0x4, fixed_abs, tag = 'smem constant byte address 0x4 - core index']
  #allocation1 [shape = 'u32[144,128]{1,0:T(1,128)}', space=vmem, size = 0x12000, scoped, tag = 'internal scratch']
  #allocation2 [shape = 'f32[8,256]{1,0:T(8,128)}', space=vmem, size = 0x2000, scoped, tag = 'scratch operand']
  #allocation3 [shape = 'bf16[72,256]{1,0:T(8,128)(2,1)}', space=vmem, size = 0x9000, scoped, tag = 'scratch operand']
  #allocation4 [shape = 'bf16[36,256]{1,0:T(8,128)(2,1)}', space=vmem, size = 0x5000, scoped, tag = 'scratch operand']
  %s0 = inlined_call_operand.vmem [shape: f32[8,256], index: 0, kind: input, shape index: {}]
  %s1 = inlined_call_operand.vmem [shape: f32[8,64], index: 1, kind: input, shape index: {}]
  %s2 = inlined_call_operand.vmem [shape: f32[64,256], index: 2, kind: input, shape index: {}]
  %s3 = inlined_call_operand.vmem [shape: f32[9,256], index: 3, kind: input, shape index: {}]
  %s4 = inlined_call_operand.vmem [shape: bf16[4,72], index: 4, kind: input, shape index: {}]
  %s5 = inlined_call_operand.vmem [shape: f32[4,1], index: 5, kind: input, shape index: {}]
  %s6 = inlined_call_operand.vmem [shape: f32[4,1], index: 6, kind: input, shape index: {}]
  %s7 = inlined_call_operand.vmem [shape: f32[4,1], index: 7, kind: input, shape index: {}]
  %s8 = inlined_call_operand.vmem [shape: bf16[4,36], index: 8, kind: input, shape index: {}]
  %s9 = inlined_call_operand.vmem [shape: f32[4,1], index: 9, kind: input, shape index: {}]
  %s10 = inlined_call_operand.vmem [shape: f32[4,1], index: 10, kind: input, shape index: {}]
  %s11 = inlined_call_operand.vmem [shape: f32[4,1], index: 11, kind: input, shape index: {}]
  %s12 = inlined_call_operand.vmem [shape: f32[8,256], index: 12, kind: output, shape index: {}]
  %s13 = sld [smem:[#allocation0]]
  $region58: #{up_forward.1} parent=0
    _
  %s15 = ssub.s32 1, %s13
  %s16 = scalar_select 0, %s15, %s13
  // Predicated region
  $region2: #{up_forward.1} parent=0 // pred_check
    _
  $region3: #{up_forward.1} parent=0 // pred_check_branch
    %18 = sbr.rel (0) target = $region5
  $region4: #{up_forward.1} parent=0 // pred_region
    _
  $region5: #{up_forward.1} parent=0 // pred_fallthru
    _
  // Predicated region
  $region6: #{up_forward.1} parent=0 // pred_check
    _
  $region7: #{up_forward.1} parent=0 // pred_check_branch
    %20 = sbr.rel (0) target = $region9
  $region8: #{up_forward.1} parent=0 // pred_region
    _
  $region9: #{up_forward.1} parent=0 // pred_fallthru
    _
  // Predicated region
  $region10: #{up_forward.1} parent=0 // pred_check
    _
  $region11: #{up_forward.1} parent=0 // pred_check_branch
    %22 = sbr.rel (0) target = $region13
  $region12: #{up_forward.1} parent=0 // pred_region
    _
  $region13: #{up_forward.1} parent=0 // pred_fallthru
    _
  // Predicated region
  $region14: #{up_forward.1} parent=0 // pred_check
    _
  $region15: #{up_forward.1} parent=0 // pred_check_branch
    %24 = sbr.rel (0) target = $region17
  $region16: #{up_forward.1} parent=0 // pred_region
    _
  $region17: #{up_forward.1} parent=0 // pred_fallthru
    _
  // Predicated region
  $region18: #{up_forward.1} parent=0 // pred_check
    _
  $region19: #{up_forward.1} parent=0 // pred_check_branch
    %26 = sbr.rel (0) target = $region21
  $region20: #{up_forward.1} parent=0 // pred_region
    _
  $region21: #{up_forward.1} parent=0 // pred_fallthru
    _
  // Predicated region
  $region22: #{up_forward.1} parent=0 // pred_check
    _
  $region23: #{up_forward.1} parent=0 // pred_check_branch
    %28 = sbr.rel (0) target = $region25
  $region24: #{up_forward.1} parent=0 // pred_region
    _
  $region25: #{up_forward.1} parent=0 // pred_fallthru
    _
  // Predicated region
  $region26: #{up_forward.1} parent=0 // pred_check
    _
  $region27: #{up_forward.1} parent=0 // pred_check_branch
    %30 = sbr.rel (0) target = $region29
  $region28: #{up_forward.1} parent=0 // pred_region
    _
  $region29: #{up_forward.1} parent=0 // pred_fallthru
    _
  // Predicated region
  $region30: #{up_forward.1} parent=0 // pred_check
    _
  $region31: #{up_forward.1} parent=0 // pred_check_branch
    %32 = sbr.rel (0) target = $region33
  $region32: #{up_forward.1} parent=0 // pred_region
    _
  $region33: #{up_forward.1} parent=0 // pred_fallthru
    _
  // Predicated region
  $region34: #{up_forward.1} parent=0 // pred_check
    _
  $region35: #{up_forward.1} parent=0 // pred_check_branch
    %34 = sbr.rel (0) target = $region37
  $region36: #{up_forward.1} parent=0 // pred_region
    _
  $region37: #{up_forward.1} parent=0 // pred_fallthru
    _
  // Predicated region
  $region38: #{up_forward.1} parent=0 // pred_check
    _
  $region39: #{up_forward.1} parent=0 // pred_check_branch
    %36 = sbr.rel (0) target = $region41
  $region40: #{up_forward.1} parent=0 // pred_region
    _
  $region41: #{up_forward.1} parent=0 // pred_fallthru
    _
  // Predicated region
  $region42: #{up_forward.1} parent=0 // pred_check
    _
  $region43: #{up_forward.1} parent=0 // pred_check_branch
    %38 = sbr.rel (0) target = $region45
  $region44: #{up_forward.1} parent=0 // pred_region
    _
  $region45: #{up_forward.1} parent=0 // pred_fallthru
    _
  // Predicated region
  $region46: #{up_forward.1} parent=0 // pred_check
    _
  $region47: #{up_forward.1} parent=0 // pred_check_branch
    %40 = sbr.rel (0) target = $region49
  $region48: #{up_forward.1} parent=0 // pred_region
    _
  $region49: #{up_forward.1} parent=0 // pred_fallthru
    _
  %v42 = vld [vmem:[%s1] sm:$0xff]
  %v43 = vld [vmem:[%s2] sm:$0xff]
  %v44 = vld [vmem:[%s2 + $0x8] sm:$0xff]
  %v45 = vld [vmem:[%s2 + $0x10] sm:$0xff]
  %v46 = vld [vmem:[%s2 + $0x18] sm:$0xff]
  %v47 = vld [vmem:[%s2 + $0x20] sm:$0xff]
  %v48 = vld [vmem:[%s2 + $0x28] sm:$0xff]
  %v49 = vld [vmem:[%s2 + $0x30] sm:$0xff]
  %v50 = vld [vmem:[%s2 + $0x38] sm:$0xff]
  %v51 = vld [vmem:[%s2 + $0x40] sm:$0xff]
  %v52 = vld [vmem:[%s2 + $0x48] sm:$0xff]
  %v53 = vld [vmem:[%s2 + $0x50] sm:$0xff]
  %v54 = vld [vmem:[%s2 + $0x58] sm:$0xff]
  %v55 = vld [vmem:[%s2 + $0x60] sm:$0xff]
  %v56 = vld [vmem:[%s2 + $0x68] sm:$0xff]
  %v57 = vld [vmem:[%s2 + $0x70] sm:$0xff]
  %v58 = vld [vmem:[%s2 + $0x78] sm:$0xff]
  %vm59 = vcmask 523264
  %v61 = vsel %vm59, %v42, 0
  %63 = vmatprep.subr.mxu0 %v44
  %64 = vmatpush1.msra.mxu0 %v43
  %65 = vmatprep.subr.mxu0 %v46
  %66 = vmatpush1.msra.mxu0 %v45
  %67 = vmatprep.subr.mxu0 %v48
  %68 = vmatpush1.msra.mxu0 %v47
  %69 = vmatprep.subr.mxu0 %v50
  %70 = vmatpush1.msra.mxu0 %v49
  %71 = vmatprep.subr.mxu0 %v52
  %72 = vmatpush1.msra.mxu0 %v51
  %73 = vmatprep.subr.mxu0 %v54
  %74 = vmatpush1.msra.mxu0 %v53
  %75 = vmatprep.subr.mxu0 %v56
  %76 = vmatpush1.msra.mxu0 %v55
  %77 = vmatprep.subr.mxu0 %v58
  %78 = vmatpush1.msra.mxu0 %v57
  %79 = vmatprep.subr.mxu0 0.0
  %80 = vmatpush1.msra.mxu0 0.0
  %81 = vmatprep.subr.mxu0 0.0
  %82 = vmatpush1.msra.mxu0 0.0
  %83 = vmatprep.subr.mxu0 0.0
  %84 = vmatpush1.msra.mxu0 0.0
  %85 = vmatprep.subr.mxu0 0.0
  %86 = vmatpush1.msra.mxu0 0.0
  %87 = vmatprep.subr.mxu0 0.0
  %88 = vmatpush1.msra.mxu0 0.0
  %89 = vmatprep.subr.mxu0 0.0
  %90 = vmatpush1.msra.mxu0 0.0
  %91 = vmatprep.subr.mxu0 0.0
  %92 = vmatpush1.msra.mxu0 0.0
  %93 = vmatprep.subr.mxu0 0.0
  %94 = vmatpush1.msra.mxu0 0.0
  %95 = vmatprep.subr.mxu0 0.0
  %96 = vmatpush1.msra.mxu0 0.0
  %97 = vmatprep.subr.mxu0 0.0
  %98 = vmatpush1.msra.mxu0 0.0
  %99 = vmatprep.subr.mxu0 0.0
  %100 = vmatpush1.msra.mxu0 0.0
  %101 = vmatprep.subr.mxu0 0.0
  %102 = vmatpush1.msra.mxu0 0.0
  %103 = vmatprep.subr.mxu0 0.0
  %104 = vmatpush1.msra.mxu0 0.0
  %105 = vmatprep.subr.mxu0 0.0
  %106 = vmatpush1.msra.mxu0 0.0
  %107 = vmatprep.subr.mxu0 0.0
  %108 = vmatpush1.msra.mxu0 0.0
  %109 = vmatprep.subr.mxu0 0.0
  %110 = vmatpush1.msra.mxu0 0.0
  %111 = vmatprep.subr.mxu0 0.0
  %112 = vmatpush1.msra.mxu0 0.0
  %113 = vmatprep.subr.mxu0 0.0
  %114 = vmatpush1.msra.mxu0 0.0
  %115 = vmatprep.subr.mxu0 0.0
  %116 = vmatpush1.msra.mxu0 0.0
  %117 = vmatprep.subr.mxu0 0.0
  %118 = vmatpush1.msra.mxu0 0.0
  %119 = vmatprep.subr.mxu0 0.0
  %120 = vmatpush1.msra.mxu0 0.0
  %121 = vmatprep.subr.mxu0 0.0
  %122 = vmatpush1.msra.mxu0 0.0
  %123 = vmatprep.subr.mxu0 0.0
  %124 = vmatpush1.msra.mxu0 0.0
  %125 = vmatprep.subr.mxu0 0.0
  %126 = vmatpush1.msra.mxu0 0.0
  %127 = vmatprep.mubr.f32.mxu0 0.0
  %128 = vmatmul.mubr.f32.gmra.mrb[0].mxu0 %v61
  %v129 = vpop.f32.mrb[0].mxu0
  %v130 = vadd.f32 0.0, %v129
  %v131 = vpop.f32.mrb[0].mxu0
  %v132 = vadd.f32 0.0, %v131
  %133 = vdwg.mxu0
  %v134 = vld [vmem:[%s3] sm:$0xff]
  %v135 = vld [vmem:[%s3 + $0x8] sm:$0xff]
  %v136 = vld [vmem:[%s3 + $0x10] sm:$0x1]
  %v137 = vld [vmem:[%s3 + $0x18] sm:$0x1]
  %v138 = vld [vmem:[%s0] sm:$0xf]
  %v139 = vld [vmem:[%s0 + $0x8] sm:$0xf]
  %140 = vrot.lane.b32.xlu0 %v138, 17
  %v141 = vpop.permute.xlu0 %140
  %142 = vrot.lane.b32.xlu0 %v139, 17
  %v143 = vpop.permute.xlu0 %142
  %v144 = vlaneseq
  %v145 = vand.u32 %v144, 127
  %vm146 = vcmp.lt.s32.totalorder %v145, 17
  %v147 = vsel %vm146, %v141, %v143
  %v148 = vsel %vm146, %v143, %v141
  %v149 = vlaneseq
  %v150 = vshrl.u32 %v149, 7
  %v151 = vsub.s32 0, %v150
  %v152 = vrot.slane %v134, %v151
  %v153 = vlaneseq
  %v154 = vshrl.u32 %v153, 7
  %v155 = vsub.s32 0, %v154
  %v156 = vrot.slane %v135, %v155
  %v157 = vmul.f32 %v148, %v152
  %v158 = vmul.f32 %v147, %v156
  %v159 = vpack.c.bf16 %v157, %v157
  %v160 = vpack.c.bf16 %v158, %v158
  %v163 = vunpack.c.l.b16 %v159
  %v164 = vunpack.c.l.b16 %v160
  %v165 = vpack.c.b16 %v164, %v163
  %167 = vst [vmem:[#allocation3] sm:$0x33] %v165
  %168 = vrot.lane.b32.xlu0 %v138, 16
  %v169 = vpop.permute.xlu0 %168
  %170 = vrot.lane.b32.xlu0 %v139, 16
  %v171 = vpop.permute.xlu0 %170
  %vm172 = vcmp.lt.s32.totalorder %v145, 16
  %v173 = vsel %vm172, %v169, %v171
  %v174 = vsel %vm172, %v171, %v169
  %v175 = vlaneseq
  %v176 = vshrl.u32 %v175, 7
  %v177 = vsub.s32 1, %v176
  %v178 = vrot.slane %v134, %v177
  %v179 = vlaneseq
  %v180 = vshrl.u32 %v179, 7
  %v181 = vsub.s32 1, %v180
  %v182 = vrot.slane %v135, %v181
  %v183 = vmul.f32 %v174, %v178
  %v184 = vmul.f32 %v173, %v182
  %v185 = vpack.c.bf16 %v183, %v183
  %v186 = vpack.c.bf16 %v184, %v184
  %v189 = vunpack.c.l.b16 %v185
  %v190 = vunpack.c.l.b16 %v186
  %v191 = vpack.c.b16 %v190, %v189
  %193 = vst [vmem:[#allocation3 + $0x8] sm:$0x33] %v191
  %194 = vrot.lane.b32.xlu0 %v138, 15
  %v195 = vpop.permute.xlu0 %194
  %196 = vrot.lane.b32.xlu0 %v139, 15
  %v197 = vpop.permute.xlu0 %196
  %vm198 = vcmp.lt.s32.totalorder %v145, 15
  %v199 = vsel %vm198, %v195, %v197
  %v200 = vsel %vm198, %v197, %v195
  %v201 = vlaneseq
  %v202 = vshrl.u32 %v201, 7
  %v203 = vsub.s32 2, %v202
  %v204 = vrot.slane %v134, %v203
  %v205 = vlaneseq
  %v206 = vshrl.u32 %v205, 7
  %v207 = vsub.s32 2, %v206
  %v208 = vrot.slane %v135, %v207
  %v209 = vmul.f32 %v200, %v204
  %v210 = vmul.f32 %v199, %v208
  %v211 = vpack.c.bf16 %v209, %v209
  %v212 = vpack.c.bf16 %v210, %v210
  %v215 = vunpack.c.l.b16 %v211
  %v216 = vunpack.c.l.b16 %v212
  %v217 = vpack.c.b16 %v216, %v215
  %219 = vst [vmem:[#allocation3 + $0x10] sm:$0x33] %v217
  %220 = vrot.lane.b32.xlu0 %v138, 1
  %v221 = vpop.permute.xlu0 %220
  %222 = vrot.lane.b32.xlu0 %v139, 1
  %v223 = vpop.permute.xlu0 %222
  %vm224 = vcmp.lt.s32.totalorder %v145, 1
  %v225 = vsel %vm224, %v221, %v223
  %v226 = vsel %vm224, %v223, %v221
  %v227 = vlaneseq
  %v228 = vshrl.u32 %v227, 7
  %v229 = vsub.s32 3, %v228
  %v230 = vrot.slane %v134, %v229
  %v231 = vlaneseq
  %v232 = vshrl.u32 %v231, 7
  %v233 = vsub.s32 3, %v232
  %v234 = vrot.slane %v135, %v233
  %v235 = vmul.f32 %v226, %v230
  %v236 = vmul.f32 %v225, %v234
  %v237 = vpack.c.bf16 %v235, %v235
  %v238 = vpack.c.bf16 %v236, %v236
  %v241 = vunpack.c.l.b16 %v237
  %v242 = vunpack.c.l.b16 %v238
  %v243 = vpack.c.b16 %v242, %v241
  %245 = vst [vmem:[#allocation3 + $0x18] sm:$0x33] %v243
  %v246 = vlaneseq
  %v247 = vshrl.u32 %v246, 7
  %v248 = vsub.s32 4, %v247
  %v249 = vrot.slane %v134, %v248
  %v250 = vlaneseq
  %v251 = vshrl.u32 %v250, 7
  %v252 = vsub.s32 4, %v251
  %v253 = vrot.slane %v135, %v252
  %v254 = vmul.f32 %v138, %v249
  %v255 = vmul.f32 %v139, %v253
  %v256 = vpack.c.bf16 %v254, %v254
  %v257 = vpack.c.bf16 %v255, %v255
  %v260 = vunpack.c.l.b16 %v256
  %v261 = vunpack.c.l.b16 %v257
  %v262 = vpack.c.b16 %v261, %v260
  %264 = vst [vmem:[#allocation3 + $0x20] sm:$0x33] %v262
  %265 = vrot.lane.b32.xlu0 %v138, 127
  %v266 = vpop.permute.xlu0 %265
  %267 = vrot.lane.b32.xlu0 %v139, 127
  %v268 = vpop.permute.xlu0 %267
  %vm269 = vcmp.lt.s32.totalorder %v145, 127
  %v270 = vsel %vm269, %v266, %v268
  %v271 = vsel %vm269, %v268, %v266
  %v272 = vlaneseq
  %v273 = vshrl.u32 %v272, 7
  %v274 = vsub.s32 5, %v273
  %v275 = vrot.slane %v134, %v274
  %v276 = vlaneseq
  %v277 = vshrl.u32 %v276, 7
  %v278 = vsub.s32 5, %v277
  %v279 = vrot.slane %v135, %v278
  %v280 = vmul.f32 %v270, %v275
  %v281 = vmul.f32 %v271, %v279
  %v282 = vpack.c.bf16 %v280, %v280
  %v283 = vpack.c.bf16 %v281, %v281
  %v286 = vunpack.c.l.b16 %v282
  %v287 = vunpack.c.l.b16 %v283
  %v288 = vpack.c.b16 %v287, %v286
  %290 = vst [vmem:[#allocation3 + $0x28] sm:$0x33] %v288
  %291 = vrot.lane.b32.xlu0 %v138, 113
  %v292 = vpop.permute.xlu0 %291
  %293 = vrot.lane.b32.xlu0 %v139, 113
  %v294 = vpop.permute.xlu0 %293
  %vm295 = vcmp.lt.s32.totalorder %v145, 113
  %v296 = vsel %vm295, %v292, %v294
  %v297 = vsel %vm295, %v294, %v292
  %v298 = vlaneseq
  %v299 = vshrl.u32 %v298, 7
  %v300 = vsub.s32 6, %v299
  %v301 = vrot.slane %v134, %v300
  %v302 = vlaneseq
  %v303 = vshrl.u32 %v302, 7
  %v304 = vsub.s32 6, %v303
  %v305 = vrot.slane %v135, %v304
  %v306 = vmul.f32 %v296, %v301
  %v307 = vmul.f32 %v297, %v305
  %v308 = vpack.c.bf16 %v306, %v306
  %v309 = vpack.c.bf16 %v307, %v307
  %v312 = vunpack.c.l.b16 %v308
  %v313 = vunpack.c.l.b16 %v309
  %v314 = vpack.c.b16 %v313, %v312
  %316 = vst [vmem:[#allocation3 + $0x30] sm:$0x33] %v314
  %317 = vrot.lane.b32.xlu0 %v138, 112
  %v318 = vpop.permute.xlu0 %317
  %319 = vrot.lane.b32.xlu0 %v139, 112
  %v320 = vpop.permute.xlu0 %319
  %vm321 = vcmp.lt.s32.totalorder %v145, 112
  %v322 = vsel %vm321, %v318, %v320
  %v323 = vsel %vm321, %v320, %v318
  %v324 = vlaneseq
  %v325 = vshrl.u32 %v324, 7
  %v326 = vsub.s32 7, %v325
  %v327 = vrot.slane %v134, %v326
  %v328 = vlaneseq
  %v329 = vshrl.u32 %v328, 7
  %v330 = vsub.s32 7, %v329
  %v331 = vrot.slane %v135, %v330
  %v332 = vmul.f32 %v322, %v327
  %v333 = vmul.f32 %v323, %v331
  %v334 = vpack.c.bf16 %v332, %v332
  %v335 = vpack.c.bf16 %v333, %v333
  %v338 = vunpack.c.l.b16 %v334
  %v339 = vunpack.c.l.b16 %v335
  %v340 = vpack.c.b16 %v339, %v338
  %342 = vst [vmem:[#allocation3 + $0x38] sm:$0x33] %v340
  %343 = vrot.lane.b32.xlu0 %v138, 111
  %v344 = vpop.permute.xlu0 %343
  %345 = vrot.lane.b32.xlu0 %v139, 111
  %v346 = vpop.permute.xlu0 %345
  %vm347 = vcmp.lt.s32.totalorder %v145, 111
  %v348 = vsel %vm347, %v344, %v346
  %v349 = vsel %vm347, %v346, %v344
  %v350 = vlaneseq
  %v351 = vshrl.u32 %v350, 7
  %v352 = vsub.s32 0, %v351
  %v353 = vrot.slane %v136, %v352
  %v354 = vlaneseq
  %v355 = vshrl.u32 %v354, 7
  %v356 = vsub.s32 0, %v355
  %v357 = vrot.slane %v137, %v356
  %v358 = vmul.f32 %v348, %v353
  %v359 = vmul.f32 %v349, %v357
  %v360 = vpack.c.bf16 %v358, %v358
  %v361 = vpack.c.bf16 %v359, %v359
  %v364 = vunpack.c.l.b16 %v360
  %v365 = vunpack.c.l.b16 %v361
  %v366 = vpack.c.b16 %v365, %v364
  %368 = vst [vmem:[#allocation3 + $0x40] sm:$0x33] %v366
  %369 = vrot.lane.b32.xlu0 %v130, 17
  %v370 = vpop.permute.xlu0 %369
  %371 = vrot.lane.b32.xlu0 %v132, 17
  %v372 = vpop.permute.xlu0 %371
  %v373 = vsel %vm146, %v370, %v372
  %v374 = vsel %vm146, %v372, %v370
  %v375 = vmul.f32 %v374, %v152
  %v376 = vmul.f32 %v373, %v156
  %v377 = vpack.c.bf16 %v375, %v375
  %v378 = vpack.c.bf16 %v376, %v376
  %v381 = vunpack.c.l.b16 %v377
  %v382 = vunpack.c.l.b16 %v378
  %v383 = vpack.c.b16 %v382, %v381
  %v384 = vrot.slane %v383, 6
  %386 = vst [vmem:[#allocation3] sm:$0xcc] %v384
  %387 = vrot.lane.b32.xlu0 %v130, 16
  %v388 = vpop.permute.xlu0 %387
  %389 = vrot.lane.b32.xlu0 %v132, 16
  %v390 = vpop.permute.xlu0 %389
  %v391 = vsel %vm172, %v388, %v390
  %v392 = vsel %vm172, %v390, %v388
  %v393 = vmul.f32 %v392, %v178
  %v394 = vmul.f32 %v391, %v182
  %v395 = vpack.c.bf16 %v393, %v393
  %v396 = vpack.c.bf16 %v394, %v394
  %v399 = vunpack.c.l.b16 %v395
  %v400 = vunpack.c.l.b16 %v396
  %v401 = vpack.c.b16 %v400, %v399
  %v402 = vrot.slane %v401, 6
  %404 = vst [vmem:[#allocation3 + $0x8] sm:$0xcc] %v402
  %405 = vrot.lane.b32.xlu0 %v130, 15
  %v406 = vpop.permute.xlu0 %405
  %407 = vrot.lane.b32.xlu0 %v132, 15
  %v408 = vpop.permute.xlu0 %407
  %v409 = vsel %vm198, %v406, %v408
  %v410 = vsel %vm198, %v408, %v406
  %v411 = vmul.f32 %v410, %v204
  %v412 = vmul.f32 %v409, %v208
  %v413 = vpack.c.bf16 %v411, %v411
  %v414 = vpack.c.bf16 %v412, %v412
  %v417 = vunpack.c.l.b16 %v413
  %v418 = vunpack.c.l.b16 %v414
  %v419 = vpack.c.b16 %v418, %v417
  %v420 = vrot.slane %v419, 6
  %422 = vst [vmem:[#allocation3 + $0x10] sm:$0xcc] %v420
  %423 = vrot.lane.b32.xlu0 %v130, 1
  %v424 = vpop.permute.xlu0 %423
  %425 = vrot.lane.b32.xlu0 %v132, 1
  %v426 = vpop.permute.xlu0 %425
  %v427 = vsel %vm224, %v424, %v426
  %v428 = vsel %vm224, %v426, %v424
  %v429 = vmul.f32 %v428, %v230
  %v430 = vmul.f32 %v427, %v234
  %v431 = vpack.c.bf16 %v429, %v429
  %v432 = vpack.c.bf16 %v430, %v430
  %v435 = vunpack.c.l.b16 %v431
  %v436 = vunpack.c.l.b16 %v432
  %v437 = vpack.c.b16 %v436, %v435
  %v438 = vrot.slane %v437, 6
  %440 = vst [vmem:[#allocation3 + $0x18] sm:$0xcc] %v438
  %v441 = vmul.f32 %v130, %v249
  %v442 = vmul.f32 %v132, %v253
  %v443 = vpack.c.bf16 %v441, %v441
  %v444 = vpack.c.bf16 %v442, %v442
  %v447 = vunpack.c.l.b16 %v443
  %v448 = vunpack.c.l.b16 %v444
  %v449 = vpack.c.b16 %v448, %v447
  %v450 = vrot.slane %v449, 6
  %452 = vst [vmem:[#allocation3 + $0x20] sm:$0xcc] %v450
  %453 = vrot.lane.b32.xlu0 %v130, 127
  %v454 = vpop.permute.xlu0 %453
  %455 = vrot.lane.b32.xlu0 %v132, 127
  %v456 = vpop.permute.xlu0 %455
  %v457 = vsel %vm269, %v454, %v456
  %v458 = vsel %vm269, %v456, %v454
  %v459 = vmul.f32 %v457, %v275
  %v460 = vmul.f32 %v458, %v279
  %v461 = vpack.c.bf16 %v459, %v459
  %v462 = vpack.c.bf16 %v460, %v460
  %v465 = vunpack.c.l.b16 %v461
  %v466 = vunpack.c.l.b16 %v462
  %v467 = vpack.c.b16 %v466, %v465
  %v468 = vrot.slane %v467, 6
  %470 = vst [vmem:[#allocation3 + $0x28] sm:$0xcc] %v468
  %471 = vrot.lane.b32.xlu0 %v130, 113
  %v472 = vpop.permute.xlu0 %471
  %473 = vrot.lane.b32.xlu0 %v132, 113
  %v474 = vpop.permute.xlu0 %473
  %v475 = vsel %vm295, %v472, %v474
  %v476 = vsel %vm295, %v474, %v472
  %v477 = vmul.f32 %v475, %v301
  %v478 = vmul.f32 %v476, %v305
  %v479 = vpack.c.bf16 %v477, %v477
  %v480 = vpack.c.bf16 %v478, %v478
  %v483 = vunpack.c.l.b16 %v479
  %v484 = vunpack.c.l.b16 %v480
  %v485 = vpack.c.b16 %v484, %v483
  %v486 = vrot.slane %v485, 6
  %488 = vst [vmem:[#allocation3 + $0x30] sm:$0xcc] %v486
  %489 = vrot.lane.b32.xlu0 %v130, 112
  %v490 = vpop.permute.xlu0 %489
  %491 = vrot.lane.b32.xlu0 %v132, 112
  %v492 = vpop.permute.xlu0 %491
  %v493 = vsel %vm321, %v490, %v492
  %v494 = vsel %vm321, %v492, %v490
  %v495 = vmul.f32 %v493, %v327
  %v496 = vmul.f32 %v494, %v331
  %v497 = vpack.c.bf16 %v495, %v495
  %v498 = vpack.c.bf16 %v496, %v496
  %v501 = vunpack.c.l.b16 %v497
  %v502 = vunpack.c.l.b16 %v498
  %v503 = vpack.c.b16 %v502, %v501
  %v504 = vrot.slane %v503, 6
  %506 = vst [vmem:[#allocation3 + $0x38] sm:$0xcc] %v504
  %507 = vrot.lane.b32.xlu0 %v130, 111
  %v508 = vpop.permute.xlu0 %507
  %509 = vrot.lane.b32.xlu0 %v132, 111
  %v510 = vpop.permute.xlu0 %509
  %v511 = vsel %vm347, %v508, %v510
  %v512 = vsel %vm347, %v510, %v508
  %v513 = vmul.f32 %v511, %v353
  %v514 = vmul.f32 %v512, %v357
  %v515 = vpack.c.bf16 %v513, %v513
  %v516 = vpack.c.bf16 %v514, %v514
  %v519 = vunpack.c.l.b16 %v515
  %v520 = vunpack.c.l.b16 %v516
  %v521 = vpack.c.b16 %v520, %v519
  %v522 = vrot.slane %v521, 6
  %524 = vst [vmem:[#allocation3 + $0x40] sm:$0xcc] %v522
  %v525 = vld [vmem:[%s4] sm:$0x3]
  %v526 = vld [vmem:[#allocation3] sm:$0xff]
  %v527 = vld [vmem:[#allocation3 + $0x8] sm:$0xff]
  %v528 = vld [vmem:[#allocation3 + $0x10] sm:$0xff]
  %v529 = vld [vmem:[#allocation3 + $0x18] sm:$0xff]
  %v530 = vld [vmem:[#allocation3 + $0x20] sm:$0xff]
  %v531 = vld [vmem:[#allocation3 + $0x28] sm:$0xff]
  %v532 = vld [vmem:[#allocation3 + $0x30] sm:$0xff]
  %v533 = vld [vmem:[#allocation3 + $0x38] sm:$0xff]
  %v534 = vld [vmem:[#allocation3 + $0x40] sm:$0xff]
  %v535 = vld [vmem:[%s5] sm:$0xf]
  %537 = vset.pattern.permute.xlu0 0
  %538 = vperm.xlu0 %537, %v535
  %v539 = vpop.permute.xlu0 %538
  %v550 = vunpack.c.l.b16 %v526
  %v551 = vunpack.c.h.b16 %v526
  %v552 = vunpack.c.l.b16 %v527
  %v553 = vunpack.c.h.b16 %v527
  %v554 = vunpack.c.l.b16 %v528
  %v555 = vunpack.c.h.b16 %v528
  %v556 = vunpack.c.l.b16 %v529
  %v557 = vunpack.c.h.b16 %v529
  %v558 = vunpack.c.l.b16 %v530
  %v559 = vunpack.c.h.b16 %v530
  %v560 = vunpack.c.l.b16 %v531
  %v561 = vunpack.c.h.b16 %v531
  %v562 = vunpack.c.l.b16 %v532
  %v563 = vunpack.c.h.b16 %v532
  %v564 = vunpack.c.l.b16 %v533
  %v565 = vunpack.c.h.b16 %v533
  %v566 = vunpack.c.l.b16 %v534
  %v567 = vunpack.c.h.b16 %v534
  %v568 = vpack.c.b16 %v552, %v550
  %v569 = vpack.c.b16 %v553, %v551
  %v570 = vpack.c.b16 %v556, %v554
  %v571 = vpack.c.b16 %v557, %v555
  %v572 = vpack.c.b16 %v560, %v558
  %v573 = vpack.c.b16 %v561, %v559
  %v574 = vpack.c.b16 %v564, %v562
  %v575 = vpack.c.b16 %v565, %v563
  %v576 = vpack.c.b16 %v566, %v566
  %v577 = vpack.c.b16 %v567, %v567
  %vm586 = vcmask 588800
  %v588 = vsel %vm586, %v525, 0
  %vm590 = vcmask 1043456
  %v592 = vsel %vm590, %v576, 0
  %v595 = vsel %vm590, %v577, 0
  %597 = vmatprep.subr.bf16.mxu0 %v569
  %598 = vmatpush1.bf16.msra.mxu0 %v568
  %599 = vmatprep.subr.bf16.mxu0 %v571
  %600 = vmatpush1.bf16.msra.mxu0 %v570
  %601 = vmatprep.subr.bf16.mxu0 %v573
  %602 = vmatpush1.bf16.msra.mxu0 %v572
  %603 = vmatprep.subr.bf16.mxu0 %v575
  %604 = vmatpush1.bf16.msra.mxu0 %v574
  %605 = vmatprep.subr.bf16.mxu0 %v595
  %606 = vmatpush1.bf16.msra.mxu0 %v592
  %607 = vmatprep.subr.bf16.mxu0 0
  %608 = vmatpush1.bf16.msra.mxu0 0
  %609 = vmatprep.subr.bf16.mxu0 0
  %610 = vmatpush1.bf16.msra.mxu0 0
  %611 = vmatprep.subr.bf16.mxu0 0
  %612 = vmatpush1.bf16.msra.mxu0 0
  %613 = vmatprep.subr.bf16.mxu0 0
  %614 = vmatpush1.bf16.msra.mxu0 0
  %615 = vmatprep.subr.bf16.mxu0 0
  %616 = vmatpush1.bf16.msra.mxu0 0
  %617 = vmatprep.subr.bf16.mxu0 0
  %618 = vmatpush1.bf16.msra.mxu0 0
  %619 = vmatprep.subr.bf16.mxu0 0
  %620 = vmatpush1.bf16.msra.mxu0 0
  %621 = vmatprep.subr.bf16.mxu0 0
  %622 = vmatpush1.bf16.msra.mxu0 0
  %623 = vmatprep.subr.bf16.mxu0 0
  %624 = vmatpush1.bf16.msra.mxu0 0
  %625 = vmatprep.subr.bf16.mxu0 0
  %626 = vmatpush1.bf16.msra.mxu0 0
  %627 = vmatprep.subr.bf16.mxu0 0
  %628 = vmatpush1.bf16.msra.mxu0 0
  %629 = vmatprep.mubr.bf16.mxu0 0
  %630 = vmatmul.mubr.bf16.gmra.mrb[0].mxu0 %v588
  %v631 = vpop.f32.mrb[0].mxu0
  %v632 = vadd.f32 %v539, %v631
  %v633 = vpop.f32.mrb[0].mxu0
  %v634 = vadd.f32 %v539, %v633
  %v635 = vpop.f32.mrb[0].mxu0
  %v636 = vpop.f32.mrb[0].mxu0
  %637 = vdwg.mxu0
  %638 = vst [vmem:[#allocation2] sm:$0xf] %v632
  %639 = vst [vmem:[#allocation2 + $0x8] sm:$0xf] %v634
  %v640 = vld [vmem:[%s0] sm:$0xf0]
  %v641 = vld [vmem:[%s0 + $0x8] sm:$0xf0]
  %v644 = vrot.slane %v640, 4
  %v645 = vrot.slane %v641, 4
  %648 = vrot.lane.b32.xlu0 %v644, 17
  %v649 = vpop.permute.xlu0 %648
  %650 = vrot.lane.b32.xlu0 %v645, 17
  %v651 = vpop.permute.xlu0 %650
  %v652 = vsel %vm146, %v649, %v651
  %v653 = vsel %vm146, %v651, %v649
  %v654 = vmul.f32 %v653, %v152
  %v655 = vmul.f32 %v652, %v156
  %v656 = vpack.c.bf16 %v654, %v654
  %v657 = vpack.c.bf16 %v655, %v655
  %v660 = vunpack.c.l.b16 %v656
  %v661 = vunpack.c.l.b16 %v657
  %v662 = vpack.c.b16 %v661, %v660
  %664 = vst [vmem:[#allocation3] sm:$0x33] %v662
  %665 = vrot.lane.b32.xlu0 %v644, 16
  %v666 = vpop.permute.xlu0 %665
  %667 = vrot.lane.b32.xlu0 %v645, 16
  %v668 = vpop.permute.xlu0 %667
  %v669 = vsel %vm172, %v666, %v668
  %v670 = vsel %vm172, %v668, %v666
  %v671 = vmul.f32 %v670, %v178
  %v672 = vmul.f32 %v669, %v182
  %v673 = vpack.c.bf16 %v671, %v671
  %v674 = vpack.c.bf16 %v672, %v672
  %v677 = vunpack.c.l.b16 %v673
  %v678 = vunpack.c.l.b16 %v674
  %v679 = vpack.c.b16 %v678, %v677
  %681 = vst [vmem:[#allocation3 + $0x8] sm:$0x33] %v679
  %682 = vrot.lane.b32.xlu0 %v644, 15
  %v683 = vpop.permute.xlu0 %682
  %684 = vrot.lane.b32.xlu0 %v645, 15
  %v685 = vpop.permute.xlu0 %684
  %v686 = vsel %vm198, %v683, %v685
  %v687 = vsel %vm198, %v685, %v683
  %v688 = vmul.f32 %v687, %v204
  %v689 = vmul.f32 %v686, %v208
  %v690 = vpack.c.bf16 %v688, %v688
  %v691 = vpack.c.bf16 %v689, %v689
  %v694 = vunpack.c.l.b16 %v690
  %v695 = vunpack.c.l.b16 %v691
  %v696 = vpack.c.b16 %v695, %v694
  %698 = vst [vmem:[#allocation3 + $0x10] sm:$0x33] %v696
  %699 = vrot.lane.b32.xlu0 %v644, 1
  %v700 = vpop.permute.xlu0 %699
  %701 = vrot.lane.b32.xlu0 %v645, 1
  %v702 = vpop.permute.xlu0 %701
  %v703 = vsel %vm224, %v700, %v702
  %v704 = vsel %vm224, %v702, %v700
  %v705 = vmul.f32 %v704, %v230
  %v706 = vmul.f32 %v703, %v234
  %v707 = vpack.c.bf16 %v705, %v705
  %v708 = vpack.c.bf16 %v706, %v706
  %v711 = vunpack.c.l.b16 %v707
  %v712 = vunpack.c.l.b16 %v708
  %v713 = vpack.c.b16 %v712, %v711
  %715 = vst [vmem:[#allocation3 + $0x18] sm:$0x33] %v713
  %v716 = vmul.f32 %v640, %v249
  %v717 = vmul.f32 %v641, %v253
  %v718 = vpack.c.bf16 %v716, %v716
  %v719 = vpack.c.bf16 %v717, %v717
  %v722 = vunpack.c.l.b16 %v718
  %v723 = vunpack.c.l.b16 %v719
  %v724 = vpack.c.b16 %v723, %v722
  %v725 = vrot.slane %v724, 6
  %v726 = vrot.slane %v725, 4
  %728 = vst [vmem:[#allocation3 + $0x20] sm:$0x33] %v726
  %729 = vrot.lane.b32.xlu0 %v644, 127
  %v730 = vpop.permute.xlu0 %729
  %731 = vrot.lane.b32.xlu0 %v645, 127
  %v732 = vpop.permute.xlu0 %731
  %v733 = vsel %vm269, %v730, %v732
  %v734 = vsel %vm269, %v732, %v730
  %v735 = vmul.f32 %v733, %v275
  %v736 = vmul.f32 %v734, %v279
  %v737 = vpack.c.bf16 %v735, %v735
  %v738 = vpack.c.bf16 %v736, %v736
  %v741 = vunpack.c.l.b16 %v737
  %v742 = vunpack.c.l.b16 %v738
  %v743 = vpack.c.b16 %v742, %v741
  %745 = vst [vmem:[#allocation3 + $0x28] sm:$0x33] %v743
  %746 = vrot.lane.b32.xlu0 %v644, 113
  %v747 = vpop.permute.xlu0 %746
  %748 = vrot.lane.b32.xlu0 %v645, 113
  %v749 = vpop.permute.xlu0 %748
  %v750 = vsel %vm295, %v747, %v749
  %v751 = vsel %vm295, %v749, %v747
  %v752 = vmul.f32 %v750, %v301
  %v753 = vmul.f32 %v751, %v305
  %v754 = vpack.c.bf16 %v752, %v752
  %v755 = vpack.c.bf16 %v753, %v753
  %v758 = vunpack.c.l.b16 %v754
  %v759 = vunpack.c.l.b16 %v755
  %v760 = vpack.c.b16 %v759, %v758
  %762 = vst [vmem:[#allocation3 + $0x30] sm:$0x33] %v760
  %763 = vrot.lane.b32.xlu0 %v644, 112
  %v764 = vpop.permute.xlu0 %763
  %765 = vrot.lane.b32.xlu0 %v645, 112
  %v766 = vpop.permute.xlu0 %765
  %v767 = vsel %vm321, %v764, %v766
  %v768 = vsel %vm321, %v766, %v764
  %v769 = vmul.f32 %v767, %v327
  %v770 = vmul.f32 %v768, %v331
  %v771 = vpack.c.bf16 %v769, %v769
  %v772 = vpack.c.bf16 %v770, %v770
  %v775 = vunpack.c.l.b16 %v771
  %v776 = vunpack.c.l.b16 %v772
  %v777 = vpack.c.b16 %v776, %v775
  %779 = vst [vmem:[#allocation3 + $0x38] sm:$0x33] %v777
  %780 = vrot.lane.b32.xlu0 %v644, 111
  %v781 = vpop.permute.xlu0 %780
  %782 = vrot.lane.b32.xlu0 %v645, 111
  %v783 = vpop.permute.xlu0 %782
  %v784 = vsel %vm347, %v781, %v783
  %v785 = vsel %vm347, %v783, %v781
  %v786 = vmul.f32 %v784, %v353
  %v787 = vmul.f32 %v785, %v357
  %v788 = vpack.c.bf16 %v786, %v786
  %v789 = vpack.c.bf16 %v787, %v787
  %v792 = vunpack.c.l.b16 %v788
  %v793 = vunpack.c.l.b16 %v789
  %v794 = vpack.c.b16 %v793, %v792
  %796 = vst [vmem:[#allocation3 + $0x40] sm:$0x33] %v794
  %v799 = vrot.slane %v130, 4
  %v800 = vrot.slane %v132, 4
  %803 = vrot.lane.b32.xlu0 %v799, 17
  %v804 = vpop.permute.xlu0 %803
  %805 = vrot.lane.b32.xlu0 %v800, 17
  %v806 = vpop.permute.xlu0 %805
  %v807 = vsel %vm146, %v804, %v806
  %v808 = vsel %vm146, %v806, %v804
  %v809 = vmul.f32 %v808, %v152
  %v810 = vmul.f32 %v807, %v156
  %v811 = vpack.c.bf16 %v809, %v809
  %v812 = vpack.c.bf16 %v810, %v810
  %v815 = vunpack.c.l.b16 %v811
  %v816 = vunpack.c.l.b16 %v812
  %v817 = vpack.c.b16 %v816, %v815
  %v818 = vrot.slane %v817, 6
  %820 = vst [vmem:[#allocation3] sm:$0xcc] %v818
  %821 = vrot.lane.b32.xlu0 %v799, 16
  %v822 = vpop.permute.xlu0 %821
  %823 = vrot.lane.b32.xlu0 %v800, 16
  %v824 = vpop.permute.xlu0 %823
  %v825 = vsel %vm172, %v822, %v824
  %v826 = vsel %vm172, %v824, %v822
  %v827 = vmul.f32 %v826, %v178
  %v828 = vmul.f32 %v825, %v182
  %v829 = vpack.c.bf16 %v827, %v827
  %v830 = vpack.c.bf16 %v828, %v828
  %v833 = vunpack.c.l.b16 %v829
  %v834 = vunpack.c.l.b16 %v830
  %v835 = vpack.c.b16 %v834, %v833
  %v836 = vrot.slane %v835, 6
  %838 = vst [vmem:[#allocation3 + $0x8] sm:$0xcc] %v836
  %839 = vrot.lane.b32.xlu0 %v799, 15
  %v840 = vpop.permute.xlu0 %839
  %841 = vrot.lane.b32.xlu0 %v800, 15
  %v842 = vpop.permute.xlu0 %841
  %v843 = vsel %vm198, %v840, %v842
  %v844 = vsel %vm198, %v842, %v840
  %v845 = vmul.f32 %v844, %v204
  %v846 = vmul.f32 %v843, %v208
  %v847 = vpack.c.bf16 %v845, %v845
  %v848 = vpack.c.bf16 %v846, %v846
  %v851 = vunpack.c.l.b16 %v847
  %v852 = vunpack.c.l.b16 %v848
  %v853 = vpack.c.b16 %v852, %v851
  %v854 = vrot.slane %v853, 6
  %856 = vst [vmem:[#allocation3 + $0x10] sm:$0xcc] %v854
  %857 = vrot.lane.b32.xlu0 %v799, 1
  %v858 = vpop.permute.xlu0 %857
  %859 = vrot.lane.b32.xlu0 %v800, 1
  %v860 = vpop.permute.xlu0 %859
  %v861 = vsel %vm224, %v858, %v860
  %v862 = vsel %vm224, %v860, %v858
  %v863 = vmul.f32 %v862, %v230
  %v864 = vmul.f32 %v861, %v234
  %v865 = vpack.c.bf16 %v863, %v863
  %v866 = vpack.c.bf16 %v864, %v864
  %v869 = vunpack.c.l.b16 %v865
  %v870 = vunpack.c.l.b16 %v866
  %v871 = vpack.c.b16 %v870, %v869
  %v872 = vrot.slane %v871, 6
  %874 = vst [vmem:[#allocation3 + $0x18] sm:$0xcc] %v872
  %876 = vst [vmem:[#allocation3 + $0x20] sm:$0xcc] %v449
  %877 = vrot.lane.b32.xlu0 %v799, 127
  %v878 = vpop.permute.xlu0 %877
  %879 = vrot.lane.b32.xlu0 %v800, 127
  %v880 = vpop.permute.xlu0 %879
  %v881 = vsel %vm269, %v878, %v880
  %v882 = vsel %vm269, %v880, %v878
  %v883 = vmul.f32 %v881, %v275
  %v884 = vmul.f32 %v882, %v279
  %v885 = vpack.c.bf16 %v883, %v883
  %v886 = vpack.c.bf16 %v884, %v884
  %v889 = vunpack.c.l.b16 %v885
  %v890 = vunpack.c.l.b16 %v886
  %v891 = vpack.c.b16 %v890, %v889
  %v892 = vrot.slane %v891, 6
  %894 = vst [vmem:[#allocation3 + $0x28] sm:$0xcc] %v892
  %895 = vrot.lane.b32.xlu0 %v799, 113
  %v896 = vpop.permute.xlu0 %895
  %897 = vrot.lane.b32.xlu0 %v800, 113
  %v898 = vpop.permute.xlu0 %897
  %v899 = vsel %vm295, %v896, %v898
  %v900 = vsel %vm295, %v898, %v896
  %v901 = vmul.f32 %v899, %v301
  %v902 = vmul.f32 %v900, %v305
  %v903 = vpack.c.bf16 %v901, %v901
  %v904 = vpack.c.bf16 %v902, %v902
  %v907 = vunpack.c.l.b16 %v903
  %v908 = vunpack.c.l.b16 %v904
  %v909 = vpack.c.b16 %v908, %v907
  %v910 = vrot.slane %v909, 6
  %912 = vst [vmem:[#allocation3 + $0x30] sm:$0xcc] %v910
  %913 = vrot.lane.b32.xlu0 %v799, 112
  %v914 = vpop.permute.xlu0 %913
  %915 = vrot.lane.b32.xlu0 %v800, 112
  %v916 = vpop.permute.xlu0 %915
  %v917 = vsel %vm321, %v914, %v916
  %v918 = vsel %vm321, %v916, %v914
  %v919 = vmul.f32 %v917, %v327
  %v920 = vmul.f32 %v918, %v331
  %v921 = vpack.c.bf16 %v919, %v919
  %v922 = vpack.c.bf16 %v920, %v920
  %v925 = vunpack.c.l.b16 %v921
  %v926 = vunpack.c.l.b16 %v922
  %v927 = vpack.c.b16 %v926, %v925
  %v928 = vrot.slane %v927, 6
  %930 = vst [vmem:[#allocation3 + $0x38] sm:$0xcc] %v928
  %931 = vrot.lane.b32.xlu0 %v799, 111
  %v932 = vpop.permute.xlu0 %931
  %933 = vrot.lane.b32.xlu0 %v800, 111
  %v934 = vpop.permute.xlu0 %933
  %v935 = vsel %vm347, %v932, %v934
  %v936 = vsel %vm347, %v934, %v932
  %v937 = vmul.f32 %v935, %v353
  %v938 = vmul.f32 %v936, %v357
  %v939 = vpack.c.bf16 %v937, %v937
  %v940 = vpack.c.bf16 %v938, %v938
  %v943 = vunpack.c.l.b16 %v939
  %v944 = vunpack.c.l.b16 %v940
  %v945 = vpack.c.b16 %v944, %v943
  %v946 = vrot.slane %v945, 6
  %948 = vst [vmem:[#allocation3 + $0x40] sm:$0xcc] %v946
  %v949 = vld [vmem:[%s4] sm:$0x3]
  %v950 = vld [vmem:[#allocation3] sm:$0xff]
  %v951 = vld [vmem:[#allocation3 + $0x8] sm:$0xff]
  %v952 = vld [vmem:[#allocation3 + $0x10] sm:$0xff]
  %v953 = vld [vmem:[#allocation3 + $0x18] sm:$0xff]
  %v954 = vld [vmem:[#allocation3 + $0x20] sm:$0xff]
  %v955 = vld [vmem:[#allocation3 + $0x28] sm:$0xff]
  %v956 = vld [vmem:[#allocation3 + $0x30] sm:$0xff]
  %v957 = vld [vmem:[#allocation3 + $0x38] sm:$0xff]
  %v958 = vld [vmem:[#allocation3 + $0x40] sm:$0xff]
  %v959 = vld [vmem:[%s5] sm:$0xf]
  %961 = vset.pattern.permute.xlu0 0
  %962 = vperm.xlu0 %961, %v959
  %v963 = vpop.permute.xlu0 %962
  %v974 = vunpack.c.l.b16 %v950
  %v975 = vunpack.c.h.b16 %v950
  %v976 = vunpack.c.l.b16 %v951
  %v977 = vunpack.c.h.b16 %v951
  %v978 = vunpack.c.l.b16 %v952
  %v979 = vunpack.c.h.b16 %v952
  %v980 = vunpack.c.l.b16 %v953
  %v981 = vunpack.c.h.b16 %v953
  %v982 = vunpack.c.l.b16 %v954
  %v983 = vunpack.c.h.b16 %v954
  %v984 = vunpack.c.l.b16 %v955
  %v985 = vunpack.c.h.b16 %v955
  %v986 = vunpack.c.l.b16 %v956
  %v987 = vunpack.c.h.b16 %v956
  %v988 = vunpack.c.l.b16 %v957
  %v989 = vunpack.c.h.b16 %v957
  %v990 = vunpack.c.l.b16 %v958
  %v991 = vunpack.c.h.b16 %v958
  %v992 = vpack.c.b16 %v976, %v974
  %v993 = vpack.c.b16 %v977, %v975
  %v994 = vpack.c.b16 %v980, %v978
  %v995 = vpack.c.b16 %v981, %v979
  %v996 = vpack.c.b16 %v984, %v982
  %v997 = vpack.c.b16 %v985, %v983
  %v998 = vpack.c.b16 %v988, %v986
  %v999 = vpack.c.b16 %v989, %v987
  %v1000 = vpack.c.b16 %v990, %v990
  %v1001 = vpack.c.b16 %v991, %v991
  %v1011 = vsel %vm586, %v949, 0
  %v1014 = vsel %vm590, %v1000, 0
  %v1017 = vsel %vm590, %v1001, 0
  %1019 = vmatprep.subr.bf16.mxu0 %v993
  %1020 = vmatpush1.bf16.msra.mxu0 %v992
  %1021 = vmatprep.subr.bf16.mxu0 %v995
  %1022 = vmatpush1.bf16.msra.mxu0 %v994
  %1023 = vmatprep.subr.bf16.mxu0 %v997
  %1024 = vmatpush1.bf16.msra.mxu0 %v996
  %1025 = vmatprep.subr.bf16.mxu0 %v999
  %1026 = vmatpush1.bf16.msra.mxu0 %v998
  %1027 = vmatprep.subr.bf16.mxu0 %v1017
  %1028 = vmatpush1.bf16.msra.mxu0 %v1014
  %1029 = vmatprep.subr.bf16.mxu0 0
  %1030 = vmatpush1.bf16.msra.mxu0 0
  %1031 = vmatprep.subr.bf16.mxu0 0
  %1032 = vmatpush1.bf16.msra.mxu0 0
  %1033 = vmatprep.subr.bf16.mxu0 0
  %1034 = vmatpush1.bf16.msra.mxu0 0
  %1035 = vmatprep.subr.bf16.mxu0 0
  %1036 = vmatpush1.bf16.msra.mxu0 0
  %1037 = vmatprep.subr.bf16.mxu0 0
  %1038 = vmatpush1.bf16.msra.mxu0 0
  %1039 = vmatprep.subr.bf16.mxu0 0
  %1040 = vmatpush1.bf16.msra.mxu0 0
  %1041 = vmatprep.subr.bf16.mxu0 0
  %1042 = vmatpush1.bf16.msra.mxu0 0
  %1043 = vmatprep.subr.bf16.mxu0 0
  %1044 = vmatpush1.bf16.msra.mxu0 0
  %1045 = vmatprep.subr.bf16.mxu0 0
  %1046 = vmatpush1.bf16.msra.mxu0 0
  %1047 = vmatprep.subr.bf16.mxu0 0
  %1048 = vmatpush1.bf16.msra.mxu0 0
  %1049 = vmatprep.subr.bf16.mxu0 0
  %1050 = vmatpush1.bf16.msra.mxu0 0
  %1051 = vmatprep.mubr.bf16.mxu0 0
  %1052 = vmatmul.mubr.bf16.gmra.mrb[0].mxu0 %v1011
  %v1053 = vpop.f32.mrb[0].mxu0
  %v1054 = vadd.f32 %v963, %v1053
  %v1055 = vpop.f32.mrb[0].mxu0
  %v1056 = vadd.f32 %v963, %v1055
  %v1057 = vpop.f32.mrb[0].mxu0
  %v1058 = vpop.f32.mrb[0].mxu0
  %1059 = vdwg.mxu0
  %v1062 = vrot.slane %v1054, 4
  %v1063 = vrot.slane %v1056, 4
  %1066 = vst [vmem:[#allocation2] sm:$0xf0] %v1062
  %1067 = vst [vmem:[#allocation2 + $0x8] sm:$0xf0] %v1063
  %v1068 = vld [vmem:[%s6] sm:$0xf]
  %v1069 = vld [vmem:[%s7] sm:$0xf]
  %v1070 = vld [vmem:[#allocation2] sm:$0xf]
  %v1071 = vld [vmem:[#allocation2 + $0x8] sm:$0xf]
  %v1072 = vsel %vm590, %v1070, 0.0
  %v1073 = vsel %vm590, %v1071, 0.0
  %v1074 = vadd.f32 %v1072, %v1073
  %1075 = vadd.xlane.f32.xlu0 %v1074
  %v1076 = vpop.xlane.xlu0 %1075
  %v1077 = vadd.f32 %v1076, 0.0
  %v1078 = vmul.f32 %v1070, %v1070
  %v1079 = vmul.f32 %v1071, %v1071
  %v1080 = vsel %vm590, %v1078, 0.0
  %v1081 = vsel %vm590, %v1079, 0.0
  %v1082 = vadd.f32 %v1080, %v1081
  %1083 = vadd.xlane.f32.xlu0 %v1082
  %v1084 = vpop.xlane.xlu0 %1083
  %v1085 = vadd.f32 %v1084, 0.0
  %v1086 = vld [vmem:[#allocation2] sm:$0xf0]
  %v1087 = vld [vmem:[#allocation2 + $0x8] sm:$0xf0]
  %vm1088 = vcmask 1047556
  %v1089 = vsel %vm1088, %v1086, 0.0
  %v1090 = vsel %vm1088, %v1087, 0.0
  %v1091 = vadd.f32 %v1089, %v1090
  %1092 = vadd.xlane.f32.xlu0 %v1091
  %v1093 = vpop.xlane.xlu0 %1092
  %v1095 = vrot.slane %v1093, 4
  %v1097 = vadd.f32 %v1077, %v1095
  %v1098 = vmul.f32 %v1086, %v1086
  %v1099 = vmul.f32 %v1087, %v1087
  %v1100 = vsel %vm1088, %v1098, 0.0
  %v1101 = vsel %vm1088, %v1099, 0.0
  %v1102 = vadd.f32 %v1100, %v1101
  %1103 = vadd.xlane.f32.xlu0 %v1102
  %v1104 = vpop.xlane.xlu0 %1103
  %v1106 = vrot.slane %v1104, 4
  %v1108 = vadd.f32 %v1085, %v1106
  %v1109 = vmul.f32 %v1097, 0.001953125
  %v1110 = vmul.f32 %v1108, 0.001953125
  %v1111 = vmul.f32 %v1109, %v1109
  %v1112 = vsub.f32 %v1110, %v1111
  %v1113 = vmax.f32 %v1112, 0.0
  %v1114 = vadd.f32 %v1113, 1e-05
  %v1115 = vrsqrt.pop %v1114
  %v1116 = vmul.f32 %v1068, %v1115
  %v1117 = vmul.f32 %v1109, %v1116
  %v1118 = vsub.f32 %v1069, %v1117
  %1120 = vset.pattern.permute.xlu0 0
  %1121 = vperm.xlu0 %1120, %v1116
  %v1122 = vpop.permute.xlu0 %1121
  %v1124 = vmul.f32 %v1070, %v1122
  %v1125 = vmul.f32 %v1071, %v1122
  %1127 = vset.pattern.permute.xlu0 0
  %1128 = vperm.xlu0 %1127, %v1118
  %v1129 = vpop.permute.xlu0 %1128
  %v1131 = vadd.f32 %v1124, %v1129
  %v1132 = vadd.f32 %v1125, %v1129
  %v1133 = vmax.f32 %v1131, 0.0
  %v1134 = vmax.f32 %v1132, 0.0
  %1135 = vst [vmem:[#allocation2] sm:$0xf] %v1133
  %1136 = vst [vmem:[#allocation2 + $0x8] sm:$0xf] %v1134
  %v1137 = vld [vmem:[#allocation2] sm:$0xf0]
  %v1138 = vld [vmem:[#allocation2 + $0x8] sm:$0xf0]
  %v1139 = vrot.slane %v1122, 4
  %v1141 = vmul.f32 %v1137, %v1139
  %v1142 = vmul.f32 %v1138, %v1139
  %v1143 = vrot.slane %v1129, 4
  %v1145 = vadd.f32 %v1141, %v1143
  %v1146 = vadd.f32 %v1142, %v1143
  %v1147 = vmax.f32 %v1145, 0.0
  %v1148 = vmax.f32 %v1146, 0.0
  %1149 = vst [vmem:[#allocation2] sm:$0xf0] %v1147
  %1150 = vst [vmem:[#allocation2 + $0x8] sm:$0xf0] %v1148
  %v1151 = vld [vmem:[#allocation2] sm:$0xf]
  %v1152 = vld [vmem:[#allocation2 + $0x8] sm:$0xf]
  %1153 = vrot.lane.b32.xlu0 %v1151, 17
  %v1154 = vpop.permute.xlu0 %1153
  %1155 = vrot.lane.b32.xlu0 %v1152, 17
  %v1156 = vpop.permute.xlu0 %1155
  %v1157 = vsel %vm146, %v1154, %v1156
  %v1158 = vsel %vm146, %v1156, %v1154
  %v1159 = vmul.f32 %v1158, %v152
  %v1160 = vmul.f32 %v1157, %v156
  %v1161 = vpack.c.bf16 %v1159, %v1159
  %v1162 = vpack.c.bf16 %v1160, %v1160
  %v1165 = vunpack.c.l.b16 %v1161
  %v1166 = vunpack.c.l.b16 %v1162
  %v1167 = vpack.c.b16 %v1166, %v1165
  %1169 = vst [vmem:[#allocation4] sm:$0x33] %v1167
  %1170 = vrot.lane.b32.xlu0 %v1151, 16
  %v1171 = vpop.permute.xlu0 %1170
  %1172 = vrot.lane.b32.xlu0 %v1152, 16
  %v1173 = vpop.permute.xlu0 %1172
  %v1174 = vsel %vm172, %v1171, %v1173
  %v1175 = vsel %vm172, %v1173, %v1171
  %v1176 = vmul.f32 %v1175, %v178
  %v1177 = vmul.f32 %v1174, %v182
  %v1178 = vpack.c.bf16 %v1176, %v1176
  %v1179 = vpack.c.bf16 %v1177, %v1177
  %v1182 = vunpack.c.l.b16 %v1178
  %v1183 = vunpack.c.l.b16 %v1179
  %v1184 = vpack.c.b16 %v1183, %v1182
  %v1185 = vrot.slane %v1184, 6
  %1187 = vst [vmem:[#allocation4] sm:$0xcc] %v1185
  %1188 = vrot.lane.b32.xlu0 %v1151, 15
  %v1189 = vpop.permute.xlu0 %1188
  %1190 = vrot.lane.b32.xlu0 %v1152, 15
  %v1191 = vpop.permute.xlu0 %1190
  %v1192 = vsel %vm198, %v1189, %v1191
  %v1193 = vsel %vm198, %v1191, %v1189
  %v1194 = vmul.f32 %v1193, %v204
  %v1195 = vmul.f32 %v1192, %v208
  %v1196 = vpack.c.bf16 %v1194, %v1194
  %v1197 = vpack.c.bf16 %v1195, %v1195
  %v1200 = vunpack.c.l.b16 %v1196
  %v1201 = vunpack.c.l.b16 %v1197
  %v1202 = vpack.c.b16 %v1201, %v1200
  %1204 = vst [vmem:[#allocation4 + $0x8] sm:$0x33] %v1202
  %1205 = vrot.lane.b32.xlu0 %v1151, 1
  %v1206 = vpop.permute.xlu0 %1205
  %1207 = vrot.lane.b32.xlu0 %v1152, 1
  %v1208 = vpop.permute.xlu0 %1207
  %v1209 = vsel %vm224, %v1206, %v1208
  %v1210 = vsel %vm224, %v1208, %v1206
  %v1211 = vmul.f32 %v1210, %v230
  %v1212 = vmul.f32 %v1209, %v234
  %v1213 = vpack.c.bf16 %v1211, %v1211
  %v1214 = vpack.c.bf16 %v1212, %v1212
  %v1217 = vunpack.c.l.b16 %v1213
  %v1218 = vunpack.c.l.b16 %v1214
  %v1219 = vpack.c.b16 %v1218, %v1217
  %v1220 = vrot.slane %v1219, 6
  %1222 = vst [vmem:[#allocation4 + $0x8] sm:$0xcc] %v1220
  %v1223 = vmul.f32 %v1151, %v249
  %v1224 = vmul.f32 %v1152, %v253
  %v1225 = vpack.c.bf16 %v1223, %v1223
  %v1226 = vpack.c.bf16 %v1224, %v1224
  %v1229 = vunpack.c.l.b16 %v1225
  %v1230 = vunpack.c.l.b16 %v1226
  %v1231 = vpack.c.b16 %v1230, %v1229
  %1233 = vst [vmem:[#allocation4 + $0x10] sm:$0x33] %v1231
  %1234 = vrot.lane.b32.xlu0 %v1151, 127
  %v1235 = vpop.permute.xlu0 %1234
  %1236 = vrot.lane.b32.xlu0 %v1152, 127
  %v1237 = vpop.permute.xlu0 %1236
  %v1238 = vsel %vm269, %v1235, %v1237
  %v1239 = vsel %vm269, %v1237, %v1235
  %v1240 = vmul.f32 %v1238, %v275
  %v1241 = vmul.f32 %v1239, %v279
  %v1242 = vpack.c.bf16 %v1240, %v1240
  %v1243 = vpack.c.bf16 %v1241, %v1241
  %v1246 = vunpack.c.l.b16 %v1242
  %v1247 = vunpack.c.l.b16 %v1243
  %v1248 = vpack.c.b16 %v1247, %v1246
  %v1249 = vrot.slane %v1248, 6
  %1251 = vst [vmem:[#allocation4 + $0x10] sm:$0xcc] %v1249
  %1252 = vrot.lane.b32.xlu0 %v1151, 113
  %v1253 = vpop.permute.xlu0 %1252
  %1254 = vrot.lane.b32.xlu0 %v1152, 113
  %v1255 = vpop.permute.xlu0 %1254
  %v1256 = vsel %vm295, %v1253, %v1255
  %v1257 = vsel %vm295, %v1255, %v1253
  %v1258 = vmul.f32 %v1256, %v301
  %v1259 = vmul.f32 %v1257, %v305
  %v1260 = vpack.c.bf16 %v1258, %v1258
  %v1261 = vpack.c.bf16 %v1259, %v1259
  %v1264 = vunpack.c.l.b16 %v1260
  %v1265 = vunpack.c.l.b16 %v1261
  %v1266 = vpack.c.b16 %v1265, %v1264
  %1268 = vst [vmem:[#allocation4 + $0x18] sm:$0x33] %v1266
  %1269 = vrot.lane.b32.xlu0 %v1151, 112
  %v1270 = vpop.permute.xlu0 %1269
  %1271 = vrot.lane.b32.xlu0 %v1152, 112
  %v1272 = vpop.permute.xlu0 %1271
  %v1273 = vsel %vm321, %v1270, %v1272
  %v1274 = vsel %vm321, %v1272, %v1270
  %v1275 = vmul.f32 %v1273, %v327
  %v1276 = vmul.f32 %v1274, %v331
  %v1277 = vpack.c.bf16 %v1275, %v1275
  %v1278 = vpack.c.bf16 %v1276, %v1276
  %v1281 = vunpack.c.l.b16 %v1277
  %v1282 = vunpack.c.l.b16 %v1278
  %v1283 = vpack.c.b16 %v1282, %v1281
  %v1284 = vrot.slane %v1283, 6
  %1286 = vst [vmem:[#allocation4 + $0x18] sm:$0xcc] %v1284
  %1287 = vrot.lane.b32.xlu0 %v1151, 111
  %v1288 = vpop.permute.xlu0 %1287
  %1289 = vrot.lane.b32.xlu0 %v1152, 111
  %v1290 = vpop.permute.xlu0 %1289
  %v1291 = vsel %vm347, %v1288, %v1290
  %v1292 = vsel %vm347, %v1290, %v1288
  %v1293 = vmul.f32 %v1291, %v353
  %v1294 = vmul.f32 %v1292, %v357
  %v1295 = vpack.c.bf16 %v1293, %v1293
  %v1296 = vpack.c.bf16 %v1294, %v1294
  %v1299 = vunpack.c.l.b16 %v1295
  %v1300 = vunpack.c.l.b16 %v1296
  %v1301 = vpack.c.b16 %v1300, %v1299
  %1303 = vst [vmem:[#allocation4 + $0x20] sm:$0x33] %v1301
  %v1304 = vld [vmem:[%s8] sm:$0x3]
  %v1305 = vld [vmem:[#allocation4] sm:$0xff]
  %v1306 = vld [vmem:[#allocation4 + $0x8] sm:$0xff]
  %v1307 = vld [vmem:[#allocation4 + $0x10] sm:$0xff]
  %v1308 = vld [vmem:[#allocation4 + $0x18] sm:$0xff]
  %v1309 = vld [vmem:[#allocation4 + $0x20] sm:$0x33]
  %v1310 = vld [vmem:[%s9] sm:$0xf]
  %1312 = vset.pattern.permute.xlu0 0
  %1313 = vperm.xlu0 %1312, %v1310
  %v1314 = vpop.permute.xlu0 %1313
  %v1321 = vunpack.c.l.b16 %v1305
  %v1322 = vunpack.c.h.b16 %v1305
  %v1323 = vunpack.c.l.b16 %v1306
  %v1324 = vunpack.c.h.b16 %v1306
  %v1325 = vunpack.c.l.b16 %v1307
  %v1326 = vunpack.c.h.b16 %v1307
  %v1327 = vunpack.c.l.b16 %v1308
  %v1328 = vunpack.c.h.b16 %v1308
  %v1329 = vunpack.c.l.b16 %v1309
  %v1330 = vunpack.c.h.b16 %v1309
  %v1331 = vpack.c.b16 %v1323, %v1321
  %v1332 = vpack.c.b16 %v1324, %v1322
  %v1333 = vpack.c.b16 %v1327, %v1325
  %v1334 = vpack.c.b16 %v1328, %v1326
  %v1335 = vpack.c.b16 %v1329, %v1329
  %v1336 = vpack.c.b16 %v1330, %v1330
  %vm1341 = vcmask 293888
  %v1343 = vsel %vm1341, %v1304, 0
  %vm1345 = vcmask 1041408
  %v1347 = vsel %vm1345, %v1335, 0
  %v1350 = vsel %vm1345, %v1336, 0
  %1352 = vmatprep.subr.bf16.mxu0 %v1332
  %1353 = vmatpush1.bf16.msra.mxu0 %v1331
  %1354 = vmatprep.subr.bf16.mxu0 %v1334
  %1355 = vmatpush1.bf16.msra.mxu0 %v1333
  %1356 = vmatprep.subr.bf16.mxu0 %v1350
  %1357 = vmatpush1.bf16.msra.mxu0 %v1347
  %1358 = vmatprep.subr.bf16.mxu0 0
  %1359 = vmatpush1.bf16.msra.mxu0 0
  %1360 = vmatprep.subr.bf16.mxu0 0
  %1361 = vmatpush1.bf16.msra.mxu0 0
  %1362 = vmatprep.subr.bf16.mxu0 0
  %1363 = vmatpush1.bf16.msra.mxu0 0
  %1364 = vmatprep.subr.bf16.mxu0 0
  %1365 = vmatpush1.bf16.msra.mxu0 0
  %1366 = vmatprep.subr.bf16.mxu0 0
  %1367 = vmatpush1.bf16.msra.mxu0 0
  %1368 = vmatprep.subr.bf16.mxu0 0
  %1369 = vmatpush1.bf16.msra.mxu0 0
  %1370 = vmatprep.subr.bf16.mxu0 0
  %1371 = vmatpush1.bf16.msra.mxu0 0
  %1372 = vmatprep.subr.bf16.mxu0 0
  %1373 = vmatpush1.bf16.msra.mxu0 0
  %1374 = vmatprep.subr.bf16.mxu0 0
  %1375 = vmatpush1.bf16.msra.mxu0 0
  %1376 = vmatprep.subr.bf16.mxu0 0
  %1377 = vmatpush1.bf16.msra.mxu0 0
  %1378 = vmatprep.subr.bf16.mxu0 0
  %1379 = vmatpush1.bf16.msra.mxu0 0
  %1380 = vmatprep.subr.bf16.mxu0 0
  %1381 = vmatpush1.bf16.msra.mxu0 0
  %1382 = vmatprep.subr.bf16.mxu0 0
  %1383 = vmatpush1.bf16.msra.mxu0 0
  %1384 = vmatprep.mubr.bf16.mxu0 0
  %1385 = vmatmul.mubr.bf16.gmra.mrb[0].mxu0 %v1343
  %v1386 = vpop.f32.mrb[0].mxu0
  %v1387 = vadd.f32 %v1314, %v1386
  %v1388 = vpop.f32.mrb[0].mxu0
  %v1389 = vadd.f32 %v1314, %v1388
  %v1390 = vpop.f32.mrb[0].mxu0
  %v1391 = vpop.f32.mrb[0].mxu0
  %1392 = vdwg.mxu0
  %1393 = vst [vmem:[%s12] sm:$0xf] %v1387
  %1394 = vst [vmem:[%s12 + $0x8] sm:$0xf] %v1389
  %v1395 = vld [vmem:[#allocation2] sm:$0xf0]
  %v1396 = vld [vmem:[#allocation2 + $0x8] sm:$0xf0]
  %v1399 = vrot.slane %v1395, 4
  %v1400 = vrot.slane %v1396, 4
  %1403 = vrot.lane.b32.xlu0 %v1399, 17
  %v1404 = vpop.permute.xlu0 %1403
  %1405 = vrot.lane.b32.xlu0 %v1400, 17
  %v1406 = vpop.permute.xlu0 %1405
  %v1407 = vsel %vm146, %v1404, %v1406
  %v1408 = vsel %vm146, %v1406, %v1404
  %v1409 = vmul.f32 %v1408, %v152
  %v1410 = vmul.f32 %v1407, %v156
  %v1411 = vpack.c.bf16 %v1409, %v1409
  %v1412 = vpack.c.bf16 %v1410, %v1410
  %v1415 = vunpack.c.l.b16 %v1411
  %v1416 = vunpack.c.l.b16 %v1412
  %v1417 = vpack.c.b16 %v1416, %v1415
  %1419 = vst [vmem:[#allocation4] sm:$0x33] %v1417
  %1420 = vrot.lane.b32.xlu0 %v1399, 16
  %v1421 = vpop.permute.xlu0 %1420
  %1422 = vrot.lane.b32.xlu0 %v1400, 16
  %v1423 = vpop.permute.xlu0 %1422
  %v1424 = vsel %vm172, %v1421, %v1423
  %v1425 = vsel %vm172, %v1423, %v1421
  %v1426 = vmul.f32 %v1425, %v178
  %v1427 = vmul.f32 %v1424, %v182
  %v1428 = vpack.c.bf16 %v1426, %v1426
  %v1429 = vpack.c.bf16 %v1427, %v1427
  %v1432 = vunpack.c.l.b16 %v1428
  %v1433 = vunpack.c.l.b16 %v1429
  %v1434 = vpack.c.b16 %v1433, %v1432
  %v1435 = vrot.slane %v1434, 6
  %1437 = vst [vmem:[#allocation4] sm:$0xcc] %v1435
  %1438 = vrot.lane.b32.xlu0 %v1399, 15
  %v1439 = vpop.permute.xlu0 %1438
  %1440 = vrot.lane.b32.xlu0 %v1400, 15
  %v1441 = vpop.permute.xlu0 %1440
  %v1442 = vsel %vm198, %v1439, %v1441
  %v1443 = vsel %vm198, %v1441, %v1439
  %v1444 = vmul.f32 %v1443, %v204
  %v1445 = vmul.f32 %v1442, %v208
  %v1446 = vpack.c.bf16 %v1444, %v1444
  %v1447 = vpack.c.bf16 %v1445, %v1445
  %v1450 = vunpack.c.l.b16 %v1446
  %v1451 = vunpack.c.l.b16 %v1447
  %v1452 = vpack.c.b16 %v1451, %v1450
  %1454 = vst [vmem:[#allocation4 + $0x8] sm:$0x33] %v1452
  %1455 = vrot.lane.b32.xlu0 %v1399, 1
  %v1456 = vpop.permute.xlu0 %1455
  %1457 = vrot.lane.b32.xlu0 %v1400, 1
  %v1458 = vpop.permute.xlu0 %1457
  %v1459 = vsel %vm224, %v1456, %v1458
  %v1460 = vsel %vm224, %v1458, %v1456
  %v1461 = vmul.f32 %v1460, %v230
  %v1462 = vmul.f32 %v1459, %v234
  %v1463 = vpack.c.bf16 %v1461, %v1461
  %v1464 = vpack.c.bf16 %v1462, %v1462
  %v1467 = vunpack.c.l.b16 %v1463
  %v1468 = vunpack.c.l.b16 %v1464
  %v1469 = vpack.c.b16 %v1468, %v1467
  %v1470 = vrot.slane %v1469, 6
  %1472 = vst [vmem:[#allocation4 + $0x8] sm:$0xcc] %v1470
  %v1473 = vmul.f32 %v1395, %v249
  %v1474 = vmul.f32 %v1396, %v253
  %v1475 = vpack.c.bf16 %v1473, %v1473
  %v1476 = vpack.c.bf16 %v1474, %v1474
  %v1479 = vunpack.c.l.b16 %v1475
  %v1480 = vunpack.c.l.b16 %v1476
  %v1481 = vpack.c.b16 %v1480, %v1479
  %v1482 = vrot.slane %v1481, 6
  %v1483 = vrot.slane %v1482, 4
  %1485 = vst [vmem:[#allocation4 + $0x10] sm:$0x33] %v1483
  %1486 = vrot.lane.b32.xlu0 %v1399, 127
  %v1487 = vpop.permute.xlu0 %1486
  %1488 = vrot.lane.b32.xlu0 %v1400, 127
  %v1489 = vpop.permute.xlu0 %1488
  %v1490 = vsel %vm269, %v1487, %v1489
  %v1491 = vsel %vm269, %v1489, %v1487
  %v1492 = vmul.f32 %v1490, %v275
  %v1493 = vmul.f32 %v1491, %v279
  %v1494 = vpack.c.bf16 %v1492, %v1492
  %v1495 = vpack.c.bf16 %v1493, %v1493
  %v1498 = vunpack.c.l.b16 %v1494
  %v1499 = vunpack.c.l.b16 %v1495
  %v1500 = vpack.c.b16 %v1499, %v1498
  %v1501 = vrot.slane %v1500, 6
  %1503 = vst [vmem:[#allocation4 + $0x10] sm:$0xcc] %v1501
  %1504 = vrot.lane.b32.xlu0 %v1399, 113
  %v1505 = vpop.permute.xlu0 %1504
  %1506 = vrot.lane.b32.xlu0 %v1400, 113
  %v1507 = vpop.permute.xlu0 %1506
  %v1508 = vsel %vm295, %v1505, %v1507
  %v1509 = vsel %vm295, %v1507, %v1505
  %v1510 = vmul.f32 %v1508, %v301
  %v1511 = vmul.f32 %v1509, %v305
  %v1512 = vpack.c.bf16 %v1510, %v1510
  %v1513 = vpack.c.bf16 %v1511, %v1511
  %v1516 = vunpack.c.l.b16 %v1512
  %v1517 = vunpack.c.l.b16 %v1513
  %v1518 = vpack.c.b16 %v1517, %v1516
  %1520 = vst [vmem:[#allocation4 + $0x18] sm:$0x33] %v1518
  %1521 = vrot.lane.b32.xlu0 %v1399, 112
  %v1522 = vpop.permute.xlu0 %1521
  %1523 = vrot.lane.b32.xlu0 %v1400, 112
  %v1524 = vpop.permute.xlu0 %1523
  %v1525 = vsel %vm321, %v1522, %v1524
  %v1526 = vsel %vm321, %v1524, %v1522
  %v1527 = vmul.f32 %v1525, %v327
  %v1528 = vmul.f32 %v1526, %v331
  %v1529 = vpack.c.bf16 %v1527, %v1527
  %v1530 = vpack.c.bf16 %v1528, %v1528
  %v1533 = vunpack.c.l.b16 %v1529
  %v1534 = vunpack.c.l.b16 %v1530
  %v1535 = vpack.c.b16 %v1534, %v1533
  %v1536 = vrot.slane %v1535, 6
  %1538 = vst [vmem:[#allocation4 + $0x18] sm:$0xcc] %v1536
  %1539 = vrot.lane.b32.xlu0 %v1399, 111
  %v1540 = vpop.permute.xlu0 %1539
  %1541 = vrot.lane.b32.xlu0 %v1400, 111
  %v1542 = vpop.permute.xlu0 %1541
  %v1543 = vsel %vm347, %v1540, %v1542
  %v1544 = vsel %vm347, %v1542, %v1540
  %v1545 = vmul.f32 %v1543, %v353
  %v1546 = vmul.f32 %v1544, %v357
  %v1547 = vpack.c.bf16 %v1545, %v1545
  %v1548 = vpack.c.bf16 %v1546, %v1546
  %v1551 = vunpack.c.l.b16 %v1547
  %v1552 = vunpack.c.l.b16 %v1548
  %v1553 = vpack.c.b16 %v1552, %v1551
  %1555 = vst [vmem:[#allocation4 + $0x20] sm:$0x33] %v1553
  %v1556 = vld [vmem:[%s8] sm:$0x3]
  %v1557 = vld [vmem:[#allocation4] sm:$0xff]
  %v1558 = vld [vmem:[#allocation4 + $0x8] sm:$0xff]
  %v1559 = vld [vmem:[#allocation4 + $0x10] sm:$0xff]
  %v1560 = vld [vmem:[#allocation4 + $0x18] sm:$0xff]
  %v1561 = vld [vmem:[#allocation4 + $0x20] sm:$0x33]
  %v1562 = vld [vmem:[%s9] sm:$0xf]
  %1564 = vset.pattern.permute.xlu0 0
  %1565 = vperm.xlu0 %1564, %v1562
  %v1566 = vpop.permute.xlu0 %1565
  %v1573 = vunpack.c.l.b16 %v1557
  %v1574 = vunpack.c.h.b16 %v1557
  %v1575 = vunpack.c.l.b16 %v1558
  %v1576 = vunpack.c.h.b16 %v1558
  %v1577 = vunpack.c.l.b16 %v1559
  %v1578 = vunpack.c.h.b16 %v1559
  %v1579 = vunpack.c.l.b16 %v1560
  %v1580 = vunpack.c.h.b16 %v1560
  %v1581 = vunpack.c.l.b16 %v1561
  %v1582 = vunpack.c.h.b16 %v1561
  %v1583 = vpack.c.b16 %v1575, %v1573
  %v1584 = vpack.c.b16 %v1576, %v1574
  %v1585 = vpack.c.b16 %v1579, %v1577
  %v1586 = vpack.c.b16 %v1580, %v1578
  %v1587 = vpack.c.b16 %v1581, %v1581
  %v1588 = vpack.c.b16 %v1582, %v1582
  %v1594 = vsel %vm1341, %v1556, 0
  %v1597 = vsel %vm1345, %v1587, 0
  %v1600 = vsel %vm1345, %v1588, 0
  %1602 = vmatprep.subr.bf16.mxu0 %v1584
  %1603 = vmatpush1.bf16.msra.mxu0 %v1583
  %1604 = vmatprep.subr.bf16.mxu0 %v1586
  %1605 = vmatpush1.bf16.msra.mxu0 %v1585
  %1606 = vmatprep.subr.bf16.mxu0 %v1600
  %1607 = vmatpush1.bf16.msra.mxu0 %v1597
  %1608 = vmatprep.subr.bf16.mxu0 0
  %1609 = vmatpush1.bf16.msra.mxu0 0
  %1610 = vmatprep.subr.bf16.mxu0 0
  %1611 = vmatpush1.bf16.msra.mxu0 0
  %1612 = vmatprep.subr.bf16.mxu0 0
  %1613 = vmatpush1.bf16.msra.mxu0 0
  %1614 = vmatprep.subr.bf16.mxu0 0
  %1615 = vmatpush1.bf16.msra.mxu0 0
  %1616 = vmatprep.subr.bf16.mxu0 0
  %1617 = vmatpush1.bf16.msra.mxu0 0
  %1618 = vmatprep.subr.bf16.mxu0 0
  %1619 = vmatpush1.bf16.msra.mxu0 0
  %1620 = vmatprep.subr.bf16.mxu0 0
  %1621 = vmatpush1.bf16.msra.mxu0 0
  %1622 = vmatprep.subr.bf16.mxu0 0
  %1623 = vmatpush1.bf16.msra.mxu0 0
  %1624 = vmatprep.subr.bf16.mxu0 0
  %1625 = vmatpush1.bf16.msra.mxu0 0
  %1626 = vmatprep.subr.bf16.mxu0 0
  %1627 = vmatpush1.bf16.msra.mxu0 0
  %1628 = vmatprep.subr.bf16.mxu0 0
  %1629 = vmatpush1.bf16.msra.mxu0 0
  %1630 = vmatprep.subr.bf16.mxu0 0
  %1631 = vmatpush1.bf16.msra.mxu0 0
  %1632 = vmatprep.subr.bf16.mxu0 0
  %1633 = vmatpush1.bf16.msra.mxu0 0
  %1634 = vmatprep.mubr.bf16.mxu0 0
  %1635 = vmatmul.mubr.bf16.gmra.mrb[0].mxu0 %v1594
  %v1636 = vpop.f32.mrb[0].mxu0
  %v1637 = vadd.f32 %v1566, %v1636
  %v1638 = vpop.f32.mrb[0].mxu0
  %v1639 = vadd.f32 %v1566, %v1638
  %v1640 = vpop.f32.mrb[0].mxu0
  %v1641 = vpop.f32.mrb[0].mxu0
  %1642 = vdwg.mxu0
  %v1645 = vrot.slane %v1637, 4
  %v1646 = vrot.slane %v1639, 4
  %1649 = vst [vmem:[%s12] sm:$0xf0] %v1645
  %1650 = vst [vmem:[%s12 + $0x8] sm:$0xf0] %v1646
  %v1651 = vld [vmem:[%s10] sm:$0xf]
  %v1652 = vld [vmem:[%s11] sm:$0xf]
  %v1653 = vld [vmem:[%s12] sm:$0xf]
  %v1654 = vld [vmem:[%s12 + $0x8] sm:$0xf]
  %v1655 = vsel %vm590, %v1653, 0.0
  %v1656 = vsel %vm590, %v1654, 0.0
  %v1657 = vadd.f32 %v1655, %v1656
  %1658 = vadd.xlane.f32.xlu0 %v1657
  %v1659 = vpop.xlane.xlu0 %1658
  %v1660 = vadd.f32 %v1659, 0.0
  %v1661 = vmul.f32 %v1653, %v1653
  %v1662 = vmul.f32 %v1654, %v1654
  %v1663 = vsel %vm590, %v1661, 0.0
  %v1664 = vsel %vm590, %v1662, 0.0
  %v1665 = vadd.f32 %v1663, %v1664
  %1666 = vadd.xlane.f32.xlu0 %v1665
  %v1667 = vpop.xlane.xlu0 %1666
  %v1668 = vadd.f32 %v1667, 0.0
  %v1669 = vld [vmem:[%s12] sm:$0xf0]
  %v1670 = vld [vmem:[%s12 + $0x8] sm:$0xf0]
  %v1671 = vsel %vm1088, %v1669, 0.0
  %v1672 = vsel %vm1088, %v1670, 0.0
  %v1673 = vadd.f32 %v1671, %v1672
  %1674 = vadd.xlane.f32.xlu0 %v1673
  %v1675 = vpop.xlane.xlu0 %1674
  %v1677 = vrot.slane %v1675, 4
  %v1679 = vadd.f32 %v1660, %v1677
  %v1680 = vmul.f32 %v1669, %v1669
  %v1681 = vmul.f32 %v1670, %v1670
  %v1682 = vsel %vm1088, %v1680, 0.0
  %v1683 = vsel %vm1088, %v1681, 0.0
  %v1684 = vadd.f32 %v1682, %v1683
  %1685 = vadd.xlane.f32.xlu0 %v1684
  %v1686 = vpop.xlane.xlu0 %1685
  %v1688 = vrot.slane %v1686, 4
  %v1690 = vadd.f32 %v1668, %v1688
  %v1691 = vmul.f32 %v1679, 0.001953125
  %v1692 = vmul.f32 %v1690, 0.001953125
  %v1693 = vmul.f32 %v1691, %v1691
  %v1694 = vsub.f32 %v1692, %v1693
  %v1695 = vmax.f32 %v1694, 0.0
  %v1696 = vadd.f32 %v1695, 1e-05
  %v1697 = vrsqrt.pop %v1696
  %v1698 = vmul.f32 %v1651, %v1697
  %v1699 = vmul.f32 %v1691, %v1698
  %v1700 = vsub.f32 %v1652, %v1699
  %1702 = vset.pattern.permute.xlu0 0
  %1703 = vperm.xlu0 %1702, %v1698
  %v1704 = vpop.permute.xlu0 %1703
  %v1706 = vmul.f32 %v1653, %v1704
  %v1707 = vmul.f32 %v1654, %v1704
  %1709 = vset.pattern.permute.xlu0 0
  %1710 = vperm.xlu0 %1709, %v1700
  %v1711 = vpop.permute.xlu0 %1710
  %v1713 = vadd.f32 %v1706, %v1711
  %v1714 = vadd.f32 %v1707, %v1711
  %v1715 = vmax.f32 %v1713, 0.0
  %v1716 = vmax.f32 %v1714, 0.0
  %1717 = vst [vmem:[%s12] sm:$0xf] %v1715
  %1718 = vst [vmem:[%s12 + $0x8] sm:$0xf] %v1716
  %v1719 = vld [vmem:[%s12] sm:$0xf0]
  %v1720 = vld [vmem:[%s12 + $0x8] sm:$0xf0]
  %v1721 = vrot.slane %v1704, 4
  %v1723 = vmul.f32 %v1719, %v1721
  %v1724 = vmul.f32 %v1720, %v1721
  %v1725 = vrot.slane %v1711, 4
  %v1727 = vadd.f32 %v1723, %v1725
  %v1728 = vadd.f32 %v1724, %v1725
  %v1729 = vmax.f32 %v1727, 0.0
  %v1730 = vmax.f32 %v1728, 0.0
  %1731 = vst [vmem:[%s12] sm:$0xf0] %v1729
  %1732 = vst [vmem:[%s12 + $0x8] sm:$0xf0] %v1730
  // Predicated region
  $region50: #{up_forward.1} parent=0 // pred_check
    _
  $region51: #{up_forward.1} parent=0 // pred_check_branch
    %1734 = sbr.rel (0) target = $region53
  $region52: #{up_forward.1} parent=0 // pred_region
    _
  $region53: #{up_forward.1} parent=0 // pred_fallthru
    _
  // Predicated region
  $region54: #{up_forward.1} parent=0 // pred_check
    _
  $region55: #{up_forward.1} parent=0 // pred_check_branch
    %1736 = sbr.rel (0) target = $region57
  $region56: #{up_forward.1} parent=0 // pred_region
    _
  $region57: #{up_forward.1} parent=0 // pred_fallthru
    _

</llo_original>
